<compile_context>
chip_gen: v6e
topology: v6e:2x2x1
jax: 0.10.0
libtpu: 0.0.40
codegen_flags: <defaults>
</compile_context>

<pallas_src>
import math
import functools

import jax
import jax.numpy as jnp
from jax.experimental import pallas as pl
from jax.experimental.pallas import tpu as pltpu


# ----------------------------------------------------------------------------
# Kernel: one grid step = (batch block b, layer l)
# ----------------------------------------------------------------------------
def _layer_step_kernel(units_ref, x_in_ref,
                       wqkv_ref, bqkv_ref, wo_ref, bo_ref, g1_ref, be1_ref,
                       w1_ref, bf1_ref, w2_ref, bf2_ref, g2_ref, be2_ref,
                       wc_ref, bc_ref,
                       out_ref, x_sc, attn_sc,
                       *, n_heads, pad_value):
    l = pl.program_id(1)
    n_layers = pl.num_programs(1)

    Bb, S = units_ref.shape          # batch block, sequence length
    BS, E = x_sc.shape               # Bb * S, embedding size
    H = n_heads
    dh = E // H

    # Initialize the resident activation scratch at the first layer step.
    @pl.when(l == 0)
    def _init():
        x_sc[...] = x_in_ref[...]

    x2 = x_sc[...]                                  # (BS, E) f32
    x2_bf = x2.astype(jnp.bfloat16)

    # Key-padding bias built in-kernel (VPU compare on int32 ids); the (Bb,S,S)
    # broadcast is hoisted out of the head loop (JAX does not CSE broadcasts).
    pad_bias = jnp.where(units_ref[...] == pad_value, -1e30, 0.0).astype(jnp.float32)
    bias_bqk = jnp.broadcast_to(pad_bias[:, None, :], (Bb, S, S))

    # ---- fused QKV projection: lane-dense N = 3E, bf16 weights, f32 acc ----
    # (1/sqrt(dh) already folded into the Q columns at pack time)
    qkv = jnp.dot(x2_bf, wqkv_ref[...],
                  preferred_element_type=jnp.float32) + bqkv_ref[...]   # (BS, 3E)

    # ---- per-head attention; head outputs stored at lane offsets ----
    for h in range(H):                               # static unroll, small H
        q = qkv[:, h * dh:(h + 1) * dh].reshape(Bb, S, dh)
        k = qkv[:, E + h * dh:E + (h + 1) * dh].reshape(Bb, S, dh)
        v = qkv[:, 2 * E + h * dh:2 * E + (h + 1) * dh].reshape(Bb, S, dh)

        s = jnp.einsum('bqd,bkd->bqk', q, k,
                       preferred_element_type=jnp.float32)              # (Bb,S,S)
        s = s + bias_bqk                                                 # mask padded keys
        s = s - jnp.max(s, axis=-1, keepdims=True)
        p = jnp.exp(s)
        p = p * pl.reciprocal(jnp.sum(p, axis=-1, keepdims=True), approx=True)

        ho = jnp.einsum('bqk,bkd->bqd', p.astype(jnp.bfloat16),
                        v.astype(jnp.bfloat16),
                        preferred_element_type=jnp.float32)              # (Bb,S,dh)
        # static lane-offset store -> replaces per-head K=dh matmul / concat
        attn_sc[:, pl.ds(h * dh, dh)] = ho.reshape(BS, dh)

    # one depth-dense output projection (K = E) against the un-split wo
    attn = jnp.dot(attn_sc[...].astype(jnp.bfloat16), wo_ref[...],
                   preferred_element_type=jnp.float32) + bo_ref[...]     # (BS, E)

    # ---- residual + LayerNorm 1 (f32) ----
    y = x2 + attn
    mu = jnp.mean(y, axis=-1, keepdims=True)
    var = jnp.mean((y - mu) ** 2, axis=-1, keepdims=True)
    y = (y - mu) * jax.lax.rsqrt(var + 1e-5) * g1_ref[...] + be1_ref[...]

    # ---- feed-forward (bf16 matmuls, f32 acc, ReLU) ----
    ff = jnp.dot(y.astype(jnp.bfloat16), w1_ref[...],
                 preferred_element_type=jnp.float32) + bf1_ref[...]
    ff = jnp.maximum(ff, 0.0)
    ff = jnp.dot(ff.astype(jnp.bfloat16), w2_ref[...],
                 preferred_element_type=jnp.float32) + bf2_ref[...]

    # ---- residual + LayerNorm 2 (f32) ----
    z = y + ff
    mu = jnp.mean(z, axis=-1, keepdims=True)
    var = jnp.mean((z - mu) ** 2, axis=-1, keepdims=True)
    z = (z - mu) * jax.lax.rsqrt(var + 1e-5) * g2_ref[...] + be2_ref[...]

    x_sc[...] = z

    # ---- BOS readout + classifier + log_softmax on the last layer step ----
    @pl.when(l == n_layers - 1)
    def _readout():
        bos = z.reshape(Bb, S, E)[:, 0, :]                               # (Bb, E)
        logits = jnp.dot(bos.astype(jnp.bfloat16), wc_ref[...],
                         preferred_element_type=jnp.float32) + bc_ref[...]  # (Bb, Cpad)
        m = jnp.max(logits, axis=-1, keepdims=True)
        lse = m + jnp.log(jnp.sum(jnp.exp(logits - m), axis=-1, keepdims=True))
        out_ref[...] = logits - lse


# ----------------------------------------------------------------------------
# Wrapper: single pallas_call, grid = (batch_blocks, n_layers)
# ----------------------------------------------------------------------------
def fused_transformer_classifier(units, x, packed, *, n_layers, n_heads,
                                 pad_value, batch_block=1):
    B, S, E = x.shape
    bb = batch_block
    assert B % bb == 0, "batch must be divisible by batch_block"
    n_b = B // bb
    Hf = packed["w1"].shape[2]
    Cpad = packed["wc"].shape[1]

    # Reshape so every block equals the trailing dims of its array
    # (keeps BlockSpecs (8,128)-rule safe for any bb).
    units_r = units.reshape(n_b, bb, S)
    x_r = x.reshape(n_b, bb * S, E)

    def wmap(b, l):      # per-layer streamed weights
        return (l, 0, 0)

    def cmap(b, l):      # layer-invariant classifier weights
        return (0, 0)

    in_specs = [
        pl.BlockSpec((None, bb, S), lambda b, l: (b, 0, 0)),        # units (int32)
        pl.BlockSpec((None, bb * S, E), lambda b, l: (b, 0, 0)),    # x_in (f32)
        pl.BlockSpec((None, E, 3 * E), wmap),                       # wqkv (bf16)
        pl.BlockSpec((None, 1, 3 * E), wmap),                       # bqkv (f32)
        pl.BlockSpec((None, E, E), wmap),                           # wo (bf16)
        pl.BlockSpec((None, 1, E), wmap),                           # bo
        pl.BlockSpec((None, 1, E), wmap),                           # g1
        pl.BlockSpec((None, 1, E), wmap),                           # be1
        pl.BlockSpec((None, E, Hf), wmap),                          # w1 (bf16)
        pl.BlockSpec((None, 1, Hf), wmap),                          # bf1
        pl.BlockSpec((None, Hf, E), wmap),                          # w2 (bf16)
        pl.BlockSpec((None, 1, E), wmap),                           # bf2
        pl.BlockSpec((None, 1, E), wmap),                           # g2
        pl.BlockSpec((None, 1, E), wmap),                           # be2
        pl.BlockSpec((E, Cpad), cmap),                              # wc (bf16)
        pl.BlockSpec((1, Cpad), cmap),                              # bc (f32)
    ]
    out_specs = pl.BlockSpec((None, bb, Cpad), lambda b, l: (b, 0, 0))

    kernel = functools.partial(_layer_step_kernel, n_heads=n_heads,
                               pad_value=pad_value)

    out = pl.pallas_call(
        kernel,
        out_shape=jax.ShapeDtypeStruct((n_b, bb, Cpad), jnp.float32),
        grid_spec=pltpu.PrefetchScalarGridSpec(
            num_scalar_prefetch=0,
            grid=(n_b, n_layers),
            in_specs=in_specs,
            out_specs=out_specs,
            scratch_shapes=[pltpu.VMEM((bb * S, E), jnp.float32),   # activations
                            pltpu.VMEM((bb * S, E), jnp.float32)],  # head outputs
        ),
        compiler_params=pltpu.CompilerParams(
            dimension_semantics=("parallel", "arbitrary"),
            vmem_limit_bytes=48 * 1024 * 1024,
        ),
    )(units_r, x_r,
      packed["wqkv"], packed["bqkv"], packed["wo"], packed["bo"],
      packed["g1"], packed["be1"],
      packed["w1"], packed["bf1"], packed["w2"], packed["bf2"],
      packed["g2"], packed["be2"],
      packed["wc"], packed["bc"])
    return out.reshape(B, Cpad)


# ----------------------------------------------------------------------------
# Parameter construction / packing
# ----------------------------------------------------------------------------
def positional_encoding(max_len, d_model):
    position = jnp.arange(max_len, dtype=jnp.float32)[:, None]
    div_term = jnp.exp(jnp.arange(0, d_model, 2, dtype=jnp.float32)
                       * (-math.log(10000.0) / d_model))
    pe = jnp.zeros((max_len, d_model), jnp.float32)
    pe = pe.at[:, 0::2].set(jnp.sin(position * div_term))
    pe = pe.at[:, 1::2].set(jnp.cos(position * div_term))
    return pe


def init_params(key, *, vocab_size, embedding_size, n_heads, hidden_size,
                n_layers, total_speakers, max_len=5000):
    E, Hf = embedding_size, hidden_size
    keys = jax.random.split(key, 2 + 6 * n_layers)
    params = {
        "embedding": jax.random.normal(keys[0], (vocab_size, E), jnp.float32)
                     * (E ** -0.5),
        "pe": positional_encoding(max_len, E),
        "wc": jax.random.normal(keys[1], (E, total_speakers), jnp.float32) * 0.05,
        "bc": jnp.zeros((1, total_speakers), jnp.float32),
        "layers": [],
    }
    for l in range(n_layers):
        k = keys[2 + 6 * l: 2 + 6 * (l + 1)]
        params["layers"].append({
            "wqkv": jax.random.normal(k[0], (E, 3 * E), jnp.float32) * 0.05,
            "bqkv": jnp.zeros((1, 3 * E), jnp.float32),
            "wo": jax.random.normal(k[1], (E, E), jnp.float32) * 0.05,
            "bo": jnp.zeros((1, E), jnp.float32),
            "g1": jnp.ones((1, E), jnp.float32),
            "be1": jnp.zeros((1, E), jnp.float32),
            "w1": jax.random.normal(k[2], (E, Hf), jnp.float32) * 0.05,
            "bf1": jnp.zeros((1, Hf), jnp.float32),
            "w2": jax.random.normal(k[3], (Hf, E), jnp.float32) * 0.05,
            "bf2": jnp.zeros((1, E), jnp.float32),
            "g2": jnp.ones((1, E), jnp.float32),
            "be2": jnp.zeros((1, E), jnp.float32),
        })
    return params


def pack_params(params, *, n_heads):
    """Stack per-layer weights (leading layer dim for streaming), fold the
    attention scale into the Q columns, cast matmul weights to bf16, and
    lane-pad the classifier to a 128 multiple."""
    E = params["embedding"].shape[1]
    H = n_heads
    dh = E // H
    scale = 1.0 / math.sqrt(dh)

    def stack(name):
        return jnp.stack([lp[name] for lp in params["layers"]], axis=0)

    wqkv = stack("wqkv")                              # (L, E, 3E)
    bqkv = stack("bqkv")                              # (L, 1, 3E)
    wqkv = wqkv.at[:, :, :E].multiply(scale)          # fold 1/sqrt(dh) into Q
    bqkv = bqkv.at[:, :, :E].multiply(scale)

    packed = {
        "wqkv": wqkv.astype(jnp.bfloat16), "bqkv": bqkv,
        "wo": stack("wo").astype(jnp.bfloat16), "bo": stack("bo"),
        "g1": stack("g1"), "be1": stack("be1"),
        "w1": stack("w1").astype(jnp.bfloat16), "bf1": stack("bf1"),
        "w2": stack("w2").astype(jnp.bfloat16), "bf2": stack("bf2"),
        "g2": stack("g2"), "be2": stack("be2"),
    }
    C = params["wc"].shape[1]
    Cpad = ((C + 127) // 128) * 128
    packed["wc"] = (jnp.zeros((E, Cpad), jnp.float32)
                    .at[:, :C].set(params["wc"])).astype(jnp.bfloat16)
    packed["bc"] = jnp.full((1, Cpad), -1e30, jnp.float32).at[:, :C].set(params["bc"])
    return packed


# ----------------------------------------------------------------------------
# Forward pass (glue: embedding gather + PE in plain JAX, rest in one kernel)
# ----------------------------------------------------------------------------
def discrete_classifier_forward(units, params, packed, *, pad_value, n_heads,
                                n_layers, batch_block=1):
    """units: (B, S) int32 token ids.  Returns (B, total_speakers) log-probs."""
    B, S = units.shape
    E = params["embedding"].shape[1]
    C = params["wc"].shape[1]

    x = jnp.take(params["embedding"], units, axis=0) * math.sqrt(E)   # (B, S, E)
    x = x + params["pe"][:S][None, :, :]

    out_pad = fused_transformer_classifier(units, x, packed,
                                           n_layers=n_layers, n_heads=n_heads,
                                           pad_value=pad_value,
                                           batch_block=batch_block)
    return out_pad[:, :C]        # slice off lane padding (mandatory)


# ----------------------------------------------------------------------------
# Pure-JAX reference (f32 weights) for correctness check
# ----------------------------------------------------------------------------
def _layer_norm(x, g, b, eps=1e-5):
    mu = jnp.mean(x, axis=-1, keepdims=True)
    var = jnp.mean((x - mu) ** 2, axis=-1, keepdims=True)
    return (x - mu) * jax.lax.rsqrt(var + eps) * g + b


def reference_forward(units, params, *, pad_value, n_heads):
    B, S = units.shape
    E = params["embedding"].shape[1]
    H = n_heads
    dh = E // H
    x = jnp.take(params["embedding"], units, axis=0) * math.sqrt(E)
    x = x + params["pe"][:S][None, :, :]
    mask_bias = jnp.where(units == pad_value, -1e30, 0.0).astype(jnp.float32)
    for lp in params["layers"]:
        qkv = x @ lp["wqkv"] + lp["bqkv"][0]
        q, k, v = qkv[..., :E], qkv[..., E:2 * E], qkv[..., 2 * E:]
        q = q.reshape(B, S, H, dh)
        k = k.reshape(B, S, H, dh)
        v = v.reshape(B, S, H, dh)
        s = jnp.einsum('bqhd,bkhd->bhqk', q, k) / math.sqrt(dh)
        s = s + mask_bias[:, None, None, :]
        p = jax.nn.softmax(s, axis=-1)
        o = jnp.einsum('bhqk,bkhd->bqhd', p, v).reshape(B, S, E)
        attn = o @ lp["wo"] + lp["bo"][0]
        x = _layer_norm(x + attn, lp["g1"][0], lp["be1"][0])
        ff = jnp.maximum(x @ lp["w1"] + lp["bf1"][0], 0.0) @ lp["w2"] + lp["bf2"][0]
        x = _layer_norm(x + ff, lp["g2"][0], lp["be2"][0])
    bos = x[:, 0, :]
    logits = bos @ params["wc"] + params["bc"][0]
    return jax.nn.log_softmax(logits, axis=-1)


# ----------------------------------------------------------------------------
if __name__ == "__main__":
    VOCAB = 16
    E = 32
    N_HEADS = 4
    HIDDEN = 64
    N_LAYERS = 2
    PAD = 0
    SPEAKERS = 10
    B, S = 2, 8

    key = jax.random.PRNGKey(0)
    pkey, dkey = jax.random.split(key)
    params = init_params(pkey, vocab_size=VOCAB, embedding_size=E,
                         n_heads=N_HEADS, hidden_size=HIDDEN,
                         n_layers=N_LAYERS, total_speakers=SPEAKERS)
    packed = pack_params(params, n_heads=N_HEADS)

    units = jax.random.randint(dkey, (B, S), 1, VOCAB, dtype=jnp.int32)
    units = units.at[1, -2:].set(PAD)   # exercise the key-padding mask

    log_probs = discrete_classifier_forward(units, params, packed,
                                            pad_value=PAD, n_heads=N_HEADS,
                                            n_layers=N_LAYERS, batch_block=1)
    log_probs = jax.block_until_ready(log_probs)

    ref = jax.block_until_ready(
        reference_forward(units, params, pad_value=PAD, n_heads=N_HEADS))

    assert log_probs.shape == (B, SPEAKERS)
    assert bool(jnp.all(jnp.isfinite(log_probs)))
    # log_softmax rows must normalize to 1
    assert bool(jnp.max(jnp.abs(jnp.sum(jnp.exp(log_probs), axis=-1) - 1.0)) < 1e-3)
    # match pure-JAX f32 reference (kernel uses bf16 matmul operands, f32 acc)
    assert bool(jnp.allclose(log_probs, ref, atol=5e-2, rtol=5e-2))
    print("KERNEL_OK")
</pallas_src>

<mosaic_0001>
module attributes {stable_mosaic.version = 11 : i64} {
  func.func @_layer_step_kernel(%arg0: i32, %arg1: i32, %arg2: memref<1x1x8xi32, #tpu.memory_space<vmem>>, %arg3: memref<1x8x32xf32, #tpu.memory_space<vmem>>, %arg4: memref<1x32x96xbf16, #tpu.memory_space<vmem>>, %arg5: memref<1x1x96xf32, #tpu.memory_space<vmem>>, %arg6: memref<1x32x32xbf16, #tpu.memory_space<vmem>>, %arg7: memref<1x1x32xf32, #tpu.memory_space<vmem>>, %arg8: memref<1x1x32xf32, #tpu.memory_space<vmem>>, %arg9: memref<1x1x32xf32, #tpu.memory_space<vmem>>, %arg10: memref<1x32x64xbf16, #tpu.memory_space<vmem>>, %arg11: memref<1x1x64xf32, #tpu.memory_space<vmem>>, %arg12: memref<1x64x32xbf16, #tpu.memory_space<vmem>>, %arg13: memref<1x1x32xf32, #tpu.memory_space<vmem>>, %arg14: memref<1x1x32xf32, #tpu.memory_space<vmem>>, %arg15: memref<1x1x32xf32, #tpu.memory_space<vmem>>, %arg16: memref<32x128xbf16, #tpu.memory_space<vmem>>, %arg17: memref<1x128xf32, #tpu.memory_space<vmem>>, %arg18: memref<1x1x128xf32, #tpu.memory_space<vmem>>, %arg19: memref<8x32xf32, #tpu.memory_space<vmem>>, %arg20: memref<8x32xf32, #tpu.memory_space<vmem>>) attributes {dimension_semantics = [#tpu.dimension_semantics<parallel>, #tpu.dimension_semantics<arbitrary>], iteration_bounds = array<i64: 2, 2>, scalar_prefetch = 0 : i64, scratch_operands = 2 : i64, tpu.core_type = #tpu.core_type<tc>, window_params = [{transform_indices = @transform_0, window_bounds = array<i64: 1, 1, 8>}, {transform_indices = @transform_1, window_bounds = array<i64: 1, 8, 32>}, {transform_indices = @transform_2, window_bounds = array<i64: 1, 32, 96>}, {transform_indices = @transform_3, window_bounds = array<i64: 1, 1, 96>}, {transform_indices = @transform_4, window_bounds = array<i64: 1, 32, 32>}, {transform_indices = @transform_5, window_bounds = array<i64: 1, 1, 32>}, {transform_indices = @transform_6, window_bounds = array<i64: 1, 1, 32>}, {transform_indices = @transform_7, window_bounds = array<i64: 1, 1, 32>}, {transform_indices = @transform_8, window_bounds = array<i64: 1, 32, 64>}, {transform_indices = @transform_9, window_bounds = array<i64: 1, 1, 64>}, {transform_indices = @transform_10, window_bounds = array<i64: 1, 64, 32>}, {transform_indices = @transform_11, window_bounds = array<i64: 1, 1, 32>}, {transform_indices = @transform_12, window_bounds = array<i64: 1, 1, 32>}, {transform_indices = @transform_13, window_bounds = array<i64: 1, 1, 32>}, {pipeline_mode = #tpu.pipeline_mode<synchronous>, transform_indices = @transform_14, window_bounds = array<i64: 32, 128>}, {pipeline_mode = #tpu.pipeline_mode<synchronous>, transform_indices = @transform_15, window_bounds = array<i64: 1, 128>}, {transform_indices = @transform_16, window_bounds = array<i64: 1, 1, 128>}]} {
    %c0_i32 = arith.constant 0 : i32
    %0 = arith.cmpi eq, %arg1, %c0_i32 : i32
    %1 = arith.extui %0 : i1 to i32
    %c0_i32_0 = arith.constant 0 : i32
    %2 = arith.cmpi ne, %1, %c0_i32_0 : i32
    scf.if %2 {
      %c0_84 = arith.constant 0 : index
      %c0_85 = arith.constant 0 : index
      %c0_86 = arith.constant 0 : index
      %199 = vector.load %arg3[%c0_84, %c0_85, %c0_86] : memref<1x8x32xf32, #tpu.memory_space<vmem>>, vector<1x8x32xf32>
      %200 = vector.shape_cast %199 : vector<1x8x32xf32> to vector<8x32xf32>
      %c0_87 = arith.constant 0 : index
      %c0_88 = arith.constant 0 : index
      %201 = vector.load %arg19[%c0_87, %c0_88] : memref<8x32xf32, #tpu.memory_space<vmem>>, vector<8x32xf32>
      tpu.vector_store %arg19[%c0_87, %c0_88], %200 {strides = array<i32>} : memref<8x32xf32, #tpu.memory_space<vmem>>, vector<8x32xf32>,
    } else {
    }
    %c0 = arith.constant 0 : index
    %c0_1 = arith.constant 0 : index
    %3 = vector.load %arg19[%c0, %c0_1] : memref<8x32xf32, #tpu.memory_space<vmem>>, vector<8x32xf32>
    %4 = arith.truncf %3 : vector<8x32xf32> to vector<8x32xbf16>
    %c0_2 = arith.constant 0 : index
    %c0_3 = arith.constant 0 : index
    %c0_4 = arith.constant 0 : index
    %5 = vector.load %arg2[%c0_2, %c0_3, %c0_4] : memref<1x1x8xi32, #tpu.memory_space<vmem>>, vector<1x1x8xi32>
    %6 = vector.shape_cast %5 : vector<1x1x8xi32> to vector<1x8xi32>
    %c0_i32_5 = arith.constant 0 : i32
    %7 = vector.broadcast %c0_i32_5 : i32 to vector<1x8xi32>
    %8 = arith.cmpi eq, %6, %7 : vector<1x8xi32>
    %cst = arith.constant -1.000000e+30 : f32
    %cst_6 = arith.constant 0.000000e+00 : f32
    %9 = vector.broadcast %cst : f32 to vector<1x8xf32>
    %10 = vector.broadcast %cst_6 : f32 to vector<1x8xf32>
    %11 = arith.select %8, %9, %10 : vector<1x8xi1>, vector<1x8xf32>
    %12 = vector.shape_cast %11 : vector<1x8xf32> to vector<1x1x8xf32>
    %13 = vector.shape_cast %12 : vector<1x1x8xf32> to vector<1x1x8xf32>
    %14 = vector.broadcast %13 : vector<1x1x8xf32> to vector<1x8x8xf32>
    %c0_7 = arith.constant 0 : index
    %c0_8 = arith.constant 0 : index
    %c0_9 = arith.constant 0 : index
    %15 = vector.load %arg4[%c0_7, %c0_8, %c0_9] : memref<1x32x96xbf16, #tpu.memory_space<vmem>>, vector<1x32x96xbf16>
    %16 = vector.shape_cast %15 : vector<1x32x96xbf16> to vector<32x96xbf16>
    %cst_10 = arith.constant dense<0.000000e+00> : vector<8x96xf32>
    %17 = tpu.matmul %4, %16, %cst_10 {dimension_numbers = #tpu.dot_dimension_numbers<[1], [0], [0], [1], [0, 0, 1, 1], [], []>} : vector<8x32xbf16>, vector<32x96xbf16>, vector<8x96xf32> -> vector<8x96xf32>
    %c0_11 = arith.constant 0 : index
    %c0_12 = arith.constant 0 : index
    %c0_13 = arith.constant 0 : index
    %18 = vector.load %arg5[%c0_11, %c0_12, %c0_13] : memref<1x1x96xf32, #tpu.memory_space<vmem>>, vector<1x1x96xf32>
    %19 = vector.shape_cast %18 : vector<1x1x96xf32> to vector<1x96xf32>
    %20 = vector.broadcast %19 : vector<1x96xf32> to vector<8x96xf32>
    %21 = arith.addf %17, %20 : vector<8x96xf32>
    %22 = vector.extract_strided_slice %21 {offsets = [0, 0], sizes = [8, 8], strides = [1, 1]} : vector<8x96xf32> to vector<8x8xf32>
    %23 = vector.shape_cast %22 : vector<8x8xf32> to vector<1x8x8xf32>
    %24 = vector.extract_strided_slice %21 {offsets = [0, 32], sizes = [8, 8], strides = [1, 1]} : vector<8x96xf32> to vector<8x8xf32>
    %25 = vector.shape_cast %24 : vector<8x8xf32> to vector<1x8x8xf32>
    %26 = vector.extract_strided_slice %21 {offsets = [0, 64], sizes = [8, 8], strides = [1, 1]} : vector<8x96xf32> to vector<8x8xf32>
    %27 = vector.shape_cast %26 : vector<8x8xf32> to vector<1x8x8xf32>
    "tpu.trace_start"() <{level = 10 : i32, message = "bqd,bkd->bqk"}> : () -> ()
    %cst_14 = arith.constant dense<0.000000e+00> : vector<1x8x8xf32>
    %28 = tpu.matmul %23, %25, %cst_14 {dimension_numbers = #tpu.dot_dimension_numbers<[2], [2], [1], [1], [0, 0, 0, 1, 1, 1], [0], [0]>} : vector<1x8x8xf32>, vector<1x8x8xf32>, vector<1x8x8xf32> -> vector<1x8x8xf32>
    "tpu.trace_stop"() : () -> ()
    %29 = arith.addf %28, %14 : vector<1x8x8xf32>
    %cst_15 = arith.constant dense<0xFF800000> : vector<1x8xf32>
    %30 = vector.multi_reduction <maximumf>, %29, %cst_15 [2] : vector<1x8x8xf32> to vector<1x8xf32>
    %31 = vector.shape_cast %30 : vector<1x8xf32> to vector<1x8x1xf32>
    %32 = vector.broadcast %31 : vector<1x8x1xf32> to vector<1x8x8xf32>
    %33 = arith.subf %29, %32 : vector<1x8x8xf32>
    %34 = math.exp %33 : vector<1x8x8xf32>
    %cst_16 = arith.constant dense<0.000000e+00> : vector<1x8xf32>
    %35 = vector.multi_reduction <add>, %34, %cst_16 [2] : vector<1x8x8xf32> to vector<1x8xf32>
    %36 = vector.shape_cast %35 : vector<1x8xf32> to vector<1x8x1xf32>
    %37 = tpu.reciprocal %36 {approx = true} : vector<1x8x1xf32> -> vector<1x8x1xf32>
    %38 = vector.broadcast %37 : vector<1x8x1xf32> to vector<1x8x8xf32>
    %39 = arith.mulf %34, %38 : vector<1x8x8xf32>
    %40 = arith.truncf %39 : vector<1x8x8xf32> to vector<1x8x8xbf16>
    %41 = arith.truncf %27 : vector<1x8x8xf32> to vector<1x8x8xbf16>
    "tpu.trace_start"() <{level = 10 : i32, message = "bqk,bkd->bqd"}> : () -> ()
    %cst_17 = arith.constant dense<0.000000e+00> : vector<1x8x8xf32>
    %42 = tpu.matmul %40, %41, %cst_17 {dimension_numbers = #tpu.dot_dimension_numbers<[2], [1], [1], [2], [0, 0, 0, 1, 1, 2], [0], [0]>} : vector<1x8x8xbf16>, vector<1x8x8xbf16>, vector<1x8x8xf32> -> vector<1x8x8xf32>
    "tpu.trace_stop"() : () -> ()
    %43 = vector.shape_cast %42 : vector<1x8x8xf32> to vector<8x8xf32>
    %c0_18 = arith.constant 0 : index
    %c0_19 = arith.constant 0 : index
    %44 = vector.load %arg20[%c0_18, %c0_19] : memref<8x32xf32, #tpu.memory_space<vmem>>, vector<8x8xf32>
    tpu.vector_store %arg20[%c0_18, %c0_19], %43 {strides = array<i32>} : memref<8x32xf32, #tpu.memory_space<vmem>>, vector<8x8xf32>,
    %45 = vector.extract_strided_slice %21 {offsets = [0, 8], sizes = [8, 8], strides = [1, 1]} : vector<8x96xf32> to vector<8x8xf32>
    %46 = vector.shape_cast %45 : vector<8x8xf32> to vector<1x8x8xf32>
    %47 = vector.extract_strided_slice %21 {offsets = [0, 40], sizes = [8, 8], strides = [1, 1]} : vector<8x96xf32> to vector<8x8xf32>
    %48 = vector.shape_cast %47 : vector<8x8xf32> to vector<1x8x8xf32>
    %49 = vector.extract_strided_slice %21 {offsets = [0, 72], sizes = [8, 8], strides = [1, 1]} : vector<8x96xf32> to vector<8x8xf32>
    %50 = vector.shape_cast %49 : vector<8x8xf32> to vector<1x8x8xf32>
    "tpu.trace_start"() <{level = 10 : i32, message = "bqd,bkd->bqk"}> : () -> ()
    %cst_20 = arith.constant dense<0.000000e+00> : vector<1x8x8xf32>
    %51 = tpu.matmul %46, %48, %cst_20 {dimension_numbers = #tpu.dot_dimension_numbers<[2], [2], [1], [1], [0, 0, 0, 1, 1, 1], [0], [0]>} : vector<1x8x8xf32>, vector<1x8x8xf32>, vector<1x8x8xf32> -> vector<1x8x8xf32>
    "tpu.trace_stop"() : () -> ()
    %52 = arith.addf %51, %14 : vector<1x8x8xf32>
    %cst_21 = arith.constant dense<0xFF800000> : vector<1x8xf32>
    %53 = vector.multi_reduction <maximumf>, %52, %cst_21 [2] : vector<1x8x8xf32> to vector<1x8xf32>
    %54 = vector.shape_cast %53 : vector<1x8xf32> to vector<1x8x1xf32>
    %55 = vector.broadcast %54 : vector<1x8x1xf32> to vector<1x8x8xf32>
    %56 = arith.subf %52, %55 : vector<1x8x8xf32>
    %57 = math.exp %56 : vector<1x8x8xf32>
    %cst_22 = arith.constant dense<0.000000e+00> : vector<1x8xf32>
    %58 = vector.multi_reduction <add>, %57, %cst_22 [2] : vector<1x8x8xf32> to vector<1x8xf32>
    %59 = vector.shape_cast %58 : vector<1x8xf32> to vector<1x8x1xf32>
    %60 = tpu.reciprocal %59 {approx = true} : vector<1x8x1xf32> -> vector<1x8x1xf32>
    %61 = vector.broadcast %60 : vector<1x8x1xf32> to vector<1x8x8xf32>
    %62 = arith.mulf %57, %61 : vector<1x8x8xf32>
    %63 = arith.truncf %62 : vector<1x8x8xf32> to vector<1x8x8xbf16>
    %64 = arith.truncf %50 : vector<1x8x8xf32> to vector<1x8x8xbf16>
    "tpu.trace_start"() <{level = 10 : i32, message = "bqk,bkd->bqd"}> : () -> ()
    %cst_23 = arith.constant dense<0.000000e+00> : vector<1x8x8xf32>
    %65 = tpu.matmul %63, %64, %cst_23 {dimension_numbers = #tpu.dot_dimension_numbers<[2], [1], [1], [2], [0, 0, 0, 1, 1, 2], [0], [0]>} : vector<1x8x8xbf16>, vector<1x8x8xbf16>, vector<1x8x8xf32> -> vector<1x8x8xf32>
    "tpu.trace_stop"() : () -> ()
    %66 = vector.shape_cast %65 : vector<1x8x8xf32> to vector<8x8xf32>
    %c0_24 = arith.constant 0 : index
    %c8 = arith.constant 8 : index
    %67 = vector.load %arg20[%c0_24, %c8] : memref<8x32xf32, #tpu.memory_space<vmem>>, vector<8x8xf32>
    tpu.vector_store %arg20[%c0_24, %c8], %66 {strides = array<i32>} : memref<8x32xf32, #tpu.memory_space<vmem>>, vector<8x8xf32>,
    %68 = vector.extract_strided_slice %21 {offsets = [0, 16], sizes = [8, 8], strides = [1, 1]} : vector<8x96xf32> to vector<8x8xf32>
    %69 = vector.shape_cast %68 : vector<8x8xf32> to vector<1x8x8xf32>
    %70 = vector.extract_strided_slice %21 {offsets = [0, 48], sizes = [8, 8], strides = [1, 1]} : vector<8x96xf32> to vector<8x8xf32>
    %71 = vector.shape_cast %70 : vector<8x8xf32> to vector<1x8x8xf32>
    %72 = vector.extract_strided_slice %21 {offsets = [0, 80], sizes = [8, 8], strides = [1, 1]} : vector<8x96xf32> to vector<8x8xf32>
    %73 = vector.shape_cast %72 : vector<8x8xf32> to vector<1x8x8xf32>
    "tpu.trace_start"() <{level = 10 : i32, message = "bqd,bkd->bqk"}> : () -> ()
    %cst_25 = arith.constant dense<0.000000e+00> : vector<1x8x8xf32>
    %74 = tpu.matmul %69, %71, %cst_25 {dimension_numbers = #tpu.dot_dimension_numbers<[2], [2], [1], [1], [0, 0, 0, 1, 1, 1], [0], [0]>} : vector<1x8x8xf32>, vector<1x8x8xf32>, vector<1x8x8xf32> -> vector<1x8x8xf32>
    "tpu.trace_stop"() : () -> ()
    %75 = arith.addf %74, %14 : vector<1x8x8xf32>
    %cst_26 = arith.constant dense<0xFF800000> : vector<1x8xf32>
    %76 = vector.multi_reduction <maximumf>, %75, %cst_26 [2] : vector<1x8x8xf32> to vector<1x8xf32>
    %77 = vector.shape_cast %76 : vector<1x8xf32> to vector<1x8x1xf32>
    %78 = vector.broadcast %77 : vector<1x8x1xf32> to vector<1x8x8xf32>
    %79 = arith.subf %75, %78 : vector<1x8x8xf32>
    %80 = math.exp %79 : vector<1x8x8xf32>
    %cst_27 = arith.constant dense<0.000000e+00> : vector<1x8xf32>
    %81 = vector.multi_reduction <add>, %80, %cst_27 [2] : vector<1x8x8xf32> to vector<1x8xf32>
    %82 = vector.shape_cast %81 : vector<1x8xf32> to vector<1x8x1xf32>
    %83 = tpu.reciprocal %82 {approx = true} : vector<1x8x1xf32> -> vector<1x8x1xf32>
    %84 = vector.broadcast %83 : vector<1x8x1xf32> to vector<1x8x8xf32>
    %85 = arith.mulf %80, %84 : vector<1x8x8xf32>
    %86 = arith.truncf %85 : vector<1x8x8xf32> to vector<1x8x8xbf16>
    %87 = arith.truncf %73 : vector<1x8x8xf32> to vector<1x8x8xbf16>
    "tpu.trace_start"() <{level = 10 : i32, message = "bqk,bkd->bqd"}> : () -> ()
    %cst_28 = arith.constant dense<0.000000e+00> : vector<1x8x8xf32>
    %88 = tpu.matmul %86, %87, %cst_28 {dimension_numbers = #tpu.dot_dimension_numbers<[2], [1], [1], [2], [0, 0, 0, 1, 1, 2], [0], [0]>} : vector<1x8x8xbf16>, vector<1x8x8xbf16>, vector<1x8x8xf32> -> vector<1x8x8xf32>
    "tpu.trace_stop"() : () -> ()
    %89 = vector.shape_cast %88 : vector<1x8x8xf32> to vector<8x8xf32>
    %c0_29 = arith.constant 0 : index
    %c16 = arith.constant 16 : index
    %90 = vector.load %arg20[%c0_29, %c16] : memref<8x32xf32, #tpu.memory_space<vmem>>, vector<8x8xf32>
    tpu.vector_store %arg20[%c0_29, %c16], %89 {strides = array<i32>} : memref<8x32xf32, #tpu.memory_space<vmem>>, vector<8x8xf32>,
    %91 = vector.extract_strided_slice %21 {offsets = [0, 24], sizes = [8, 8], strides = [1, 1]} : vector<8x96xf32> to vector<8x8xf32>
    %92 = vector.shape_cast %91 : vector<8x8xf32> to vector<1x8x8xf32>
    %93 = vector.extract_strided_slice %21 {offsets = [0, 56], sizes = [8, 8], strides = [1, 1]} : vector<8x96xf32> to vector<8x8xf32>
    %94 = vector.shape_cast %93 : vector<8x8xf32> to vector<1x8x8xf32>
    %95 = vector.extract_strided_slice %21 {offsets = [0, 88], sizes = [8, 8], strides = [1, 1]} : vector<8x96xf32> to vector<8x8xf32>
    %96 = vector.shape_cast %95 : vector<8x8xf32> to vector<1x8x8xf32>
    "tpu.trace_start"() <{level = 10 : i32, message = "bqd,bkd->bqk"}> : () -> ()
    %cst_30 = arith.constant dense<0.000000e+00> : vector<1x8x8xf32>
    %97 = tpu.matmul %92, %94, %cst_30 {dimension_numbers = #tpu.dot_dimension_numbers<[2], [2], [1], [1], [0, 0, 0, 1, 1, 1], [0], [0]>} : vector<1x8x8xf32>, vector<1x8x8xf32>, vector<1x8x8xf32> -> vector<1x8x8xf32>
    "tpu.trace_stop"() : () -> ()
    %98 = arith.addf %97, %14 : vector<1x8x8xf32>
    %cst_31 = arith.constant dense<0xFF800000> : vector<1x8xf32>
    %99 = vector.multi_reduction <maximumf>, %98, %cst_31 [2] : vector<1x8x8xf32> to vector<1x8xf32>
    %100 = vector.shape_cast %99 : vector<1x8xf32> to vector<1x8x1xf32>
    %101 = vector.broadcast %100 : vector<1x8x1xf32> to vector<1x8x8xf32>
    %102 = arith.subf %98, %101 : vector<1x8x8xf32>
    %103 = math.exp %102 : vector<1x8x8xf32>
    %cst_32 = arith.constant dense<0.000000e+00> : vector<1x8xf32>
    %104 = vector.multi_reduction <add>, %103, %cst_32 [2] : vector<1x8x8xf32> to vector<1x8xf32>
    %105 = vector.shape_cast %104 : vector<1x8xf32> to vector<1x8x1xf32>
    %106 = tpu.reciprocal %105 {approx = true} : vector<1x8x1xf32> -> vector<1x8x1xf32>
    %107 = vector.broadcast %106 : vector<1x8x1xf32> to vector<1x8x8xf32>
    %108 = arith.mulf %103, %107 : vector<1x8x8xf32>
    %109 = arith.truncf %108 : vector<1x8x8xf32> to vector<1x8x8xbf16>
    %110 = arith.truncf %96 : vector<1x8x8xf32> to vector<1x8x8xbf16>
    "tpu.trace_start"() <{level = 10 : i32, message = "bqk,bkd->bqd"}> : () -> ()
    %cst_33 = arith.constant dense<0.000000e+00> : vector<1x8x8xf32>
    %111 = tpu.matmul %109, %110, %cst_33 {dimension_numbers = #tpu.dot_dimension_numbers<[2], [1], [1], [2], [0, 0, 0, 1, 1, 2], [0], [0]>} : vector<1x8x8xbf16>, vector<1x8x8xbf16>, vector<1x8x8xf32> -> vector<1x8x8xf32>
    "tpu.trace_stop"() : () -> ()
    %112 = vector.shape_cast %111 : vector<1x8x8xf32> to vector<8x8xf32>
    %c0_34 = arith.constant 0 : index
    %c24 = arith.constant 24 : index
    %113 = vector.load %arg20[%c0_34, %c24] : memref<8x32xf32, #tpu.memory_space<vmem>>, vector<8x8xf32>
    tpu.vector_store %arg20[%c0_34, %c24], %112 {strides = array<i32>} : memref<8x32xf32, #tpu.memory_space<vmem>>, vector<8x8xf32>,
    %c0_35 = arith.constant 0 : index
    %c0_36 = arith.constant 0 : index
    %114 = vector.load %arg20[%c0_35, %c0_36] : memref<8x32xf32, #tpu.memory_space<vmem>>, vector<8x32xf32>
    %115 = arith.truncf %114 : vector<8x32xf32> to vector<8x32xbf16>
    %c0_37 = arith.constant 0 : index
    %c0_38 = arith.constant 0 : index
    %c0_39 = arith.constant 0 : index
    %116 = vector.load %arg6[%c0_37, %c0_38, %c0_39] : memref<1x32x32xbf16, #tpu.memory_space<vmem>>, vector<1x32x32xbf16>
    %117 = vector.shape_cast %116 : vector<1x32x32xbf16> to vector<32x32xbf16>
    %cst_40 = arith.constant dense<0.000000e+00> : vector<8x32xf32>
    %118 = tpu.matmul %115, %117, %cst_40 {dimension_numbers = #tpu.dot_dimension_numbers<[1], [0], [0], [1], [0, 0, 1, 1], [], []>} : vector<8x32xbf16>, vector<32x32xbf16>, vector<8x32xf32> -> vector<8x32xf32>
    %c0_41 = arith.constant 0 : index
    %c0_42 = arith.constant 0 : index
    %c0_43 = arith.constant 0 : index
    %119 = vector.load %arg7[%c0_41, %c0_42, %c0_43] : memref<1x1x32xf32, #tpu.memory_space<vmem>>, vector<1x1x32xf32>
    %120 = vector.shape_cast %119 : vector<1x1x32xf32> to vector<1x32xf32>
    %121 = vector.broadcast %120 : vector<1x32xf32> to vector<8x32xf32>
    %122 = arith.addf %118, %121 : vector<8x32xf32>
    %123 = arith.addf %3, %122 : vector<8x32xf32>
    %cst_44 = arith.constant dense<0.000000e+00> : vector<8xf32>
    %124 = vector.multi_reduction <add>, %123, %cst_44 [1] : vector<8x32xf32> to vector<8xf32>
    %125 = vector.shape_cast %124 : vector<8xf32> to vector<8x1xf32>
    %cst_45 = arith.constant 3.200000e+01 : f32
    %126 = vector.broadcast %cst_45 : f32 to vector<8x1xf32>
    %127 = arith.divf %125, %126 : vector<8x1xf32>
    %128 = vector.broadcast %127 : vector<8x1xf32> to vector<8x32xf32>
    %129 = arith.subf %123, %128 : vector<8x32xf32>
    %130 = arith.mulf %129, %129 : vector<8x32xf32>
    %cst_46 = arith.constant dense<0.000000e+00> : vector<8xf32>
    %131 = vector.multi_reduction <add>, %130, %cst_46 [1] : vector<8x32xf32> to vector<8xf32>
    %132 = vector.shape_cast %131 : vector<8xf32> to vector<8x1xf32>
    %cst_47 = arith.constant 3.200000e+01 : f32
    %133 = vector.broadcast %cst_47 : f32 to vector<8x1xf32>
    %134 = arith.divf %132, %133 : vector<8x1xf32>
    %135 = vector.broadcast %127 : vector<8x1xf32> to vector<8x32xf32>
    %136 = arith.subf %123, %135 : vector<8x32xf32>
    %cst_48 = arith.constant 9.99999974E-6 : f32
    %137 = vector.broadcast %cst_48 : f32 to vector<8x1xf32>
    %138 = arith.addf %134, %137 : vector<8x1xf32>
    %139 = math.rsqrt %138 : vector<8x1xf32>
    %140 = vector.broadcast %139 : vector<8x1xf32> to vector<8x32xf32>
    %141 = arith.mulf %136, %140 : vector<8x32xf32>
    %c0_49 = arith.constant 0 : index
    %c0_50 = arith.constant 0 : index
    %c0_51 = arith.constant 0 : index
    %142 = vector.load %arg8[%c0_49, %c0_50, %c0_51] : memref<1x1x32xf32, #tpu.memory_space<vmem>>, vector<1x1x32xf32>
    %143 = vector.shape_cast %142 : vector<1x1x32xf32> to vector<1x32xf32>
    %144 = vector.broadcast %143 : vector<1x32xf32> to vector<8x32xf32>
    %145 = arith.mulf %141, %144 : vector<8x32xf32>
    %c0_52 = arith.constant 0 : index
    %c0_53 = arith.constant 0 : index
    %c0_54 = arith.constant 0 : index
    %146 = vector.load %arg9[%c0_52, %c0_53, %c0_54] : memref<1x1x32xf32, #tpu.memory_space<vmem>>, vector<1x1x32xf32>
    %147 = vector.shape_cast %146 : vector<1x1x32xf32> to vector<1x32xf32>
    %148 = vector.broadcast %147 : vector<1x32xf32> to vector<8x32xf32>
    %149 = arith.addf %145, %148 : vector<8x32xf32>
    %150 = arith.truncf %149 : vector<8x32xf32> to vector<8x32xbf16>
    %c0_55 = arith.constant 0 : index
    %c0_56 = arith.constant 0 : index
    %c0_57 = arith.constant 0 : index
    %151 = vector.load %arg10[%c0_55, %c0_56, %c0_57] : memref<1x32x64xbf16, #tpu.memory_space<vmem>>, vector<1x32x64xbf16>
    %152 = vector.shape_cast %151 : vector<1x32x64xbf16> to vector<32x64xbf16>
    %cst_58 = arith.constant dense<0.000000e+00> : vector<8x64xf32>
    %153 = tpu.matmul %150, %152, %cst_58 {dimension_numbers = #tpu.dot_dimension_numbers<[1], [0], [0], [1], [0, 0, 1, 1], [], []>} : vector<8x32xbf16>, vector<32x64xbf16>, vector<8x64xf32> -> vector<8x64xf32>
    %c0_59 = arith.constant 0 : index
    %c0_60 = arith.constant 0 : index
    %c0_61 = arith.constant 0 : index
    %154 = vector.load %arg11[%c0_59, %c0_60, %c0_61] : memref<1x1x64xf32, #tpu.memory_space<vmem>>, vector<1x1x64xf32>
    %155 = vector.shape_cast %154 : vector<1x1x64xf32> to vector<1x64xf32>
    %156 = vector.broadcast %155 : vector<1x64xf32> to vector<8x64xf32>
    %157 = arith.addf %153, %156 : vector<8x64xf32>
    %cst_62 = arith.constant 0.000000e+00 : f32
    %158 = vector.broadcast %cst_62 : f32 to vector<8x64xf32>
    %159 = arith.maximumf %157, %158 : vector<8x64xf32>
    %160 = arith.truncf %159 : vector<8x64xf32> to vector<8x64xbf16>
    %c0_63 = arith.constant 0 : index
    %c0_64 = arith.constant 0 : index
    %c0_65 = arith.constant 0 : index
    %161 = vector.load %arg12[%c0_63, %c0_64, %c0_65] : memref<1x64x32xbf16, #tpu.memory_space<vmem>>, vector<1x64x32xbf16>
    %162 = vector.shape_cast %161 : vector<1x64x32xbf16> to vector<64x32xbf16>
    %cst_66 = arith.constant dense<0.000000e+00> : vector<8x32xf32>
    %163 = tpu.matmul %160, %162, %cst_66 {dimension_numbers = #tpu.dot_dimension_numbers<[1], [0], [0], [1], [0, 0, 1, 1], [], []>} : vector<8x64xbf16>, vector<64x32xbf16>, vector<8x32xf32> -> vector<8x32xf32>
    %c0_67 = arith.constant 0 : index
    %c0_68 = arith.constant 0 : index
    %c0_69 = arith.constant 0 : index
    %164 = vector.load %arg13[%c0_67, %c0_68, %c0_69] : memref<1x1x32xf32, #tpu.memory_space<vmem>>, vector<1x1x32xf32>
    %165 = vector.shape_cast %164 : vector<1x1x32xf32> to vector<1x32xf32>
    %166 = vector.broadcast %165 : vector<1x32xf32> to vector<8x32xf32>
    %167 = arith.addf %163, %166 : vector<8x32xf32>
    %168 = arith.addf %149, %167 : vector<8x32xf32>
    %cst_70 = arith.constant dense<0.000000e+00> : vector<8xf32>
    %169 = vector.multi_reduction <add>, %168, %cst_70 [1] : vector<8x32xf32> to vector<8xf32>
    %170 = vector.shape_cast %169 : vector<8xf32> to vector<8x1xf32>
    %cst_71 = arith.constant 3.200000e+01 : f32
    %171 = vector.broadcast %cst_71 : f32 to vector<8x1xf32>
    %172 = arith.divf %170, %171 : vector<8x1xf32>
    %173 = vector.broadcast %172 : vector<8x1xf32> to vector<8x32xf32>
    %174 = arith.subf %168, %173 : vector<8x32xf32>
    %175 = arith.mulf %174, %174 : vector<8x32xf32>
    %cst_72 = arith.constant dense<0.000000e+00> : vector<8xf32>
    %176 = vector.multi_reduction <add>, %175, %cst_72 [1] : vector<8x32xf32> to vector<8xf32>
    %177 = vector.shape_cast %176 : vector<8xf32> to vector<8x1xf32>
    %cst_73 = arith.constant 3.200000e+01 : f32
    %178 = vector.broadcast %cst_73 : f32 to vector<8x1xf32>
    %179 = arith.divf %177, %178 : vector<8x1xf32>
    %180 = vector.broadcast %172 : vector<8x1xf32> to vector<8x32xf32>
    %181 = arith.subf %168, %180 : vector<8x32xf32>
    %cst_74 = arith.constant 9.99999974E-6 : f32
    %182 = vector.broadcast %cst_74 : f32 to vector<8x1xf32>
    %183 = arith.addf %179, %182 : vector<8x1xf32>
    %184 = math.rsqrt %183 : vector<8x1xf32>
    %185 = vector.broadcast %184 : vector<8x1xf32> to vector<8x32xf32>
    %186 = arith.mulf %181, %185 : vector<8x32xf32>
    %c0_75 = arith.constant 0 : index
    %c0_76 = arith.constant 0 : index
    %c0_77 = arith.constant 0 : index
    %187 = vector.load %arg14[%c0_75, %c0_76, %c0_77] : memref<1x1x32xf32, #tpu.memory_space<vmem>>, vector<1x1x32xf32>
    %188 = vector.shape_cast %187 : vector<1x1x32xf32> to vector<1x32xf32>
    %189 = vector.broadcast %188 : vector<1x32xf32> to vector<8x32xf32>
    %190 = arith.mulf %186, %189 : vector<8x32xf32>
    %c0_78 = arith.constant 0 : index
    %c0_79 = arith.constant 0 : index
    %c0_80 = arith.constant 0 : index
    %191 = vector.load %arg15[%c0_78, %c0_79, %c0_80] : memref<1x1x32xf32, #tpu.memory_space<vmem>>, vector<1x1x32xf32>
    %192 = vector.shape_cast %191 : vector<1x1x32xf32> to vector<1x32xf32>
    %193 = vector.broadcast %192 : vector<1x32xf32> to vector<8x32xf32>
    %194 = arith.addf %190, %193 : vector<8x32xf32>
    %c0_81 = arith.constant 0 : index
    %c0_82 = arith.constant 0 : index
    %195 = vector.load %arg19[%c0_81, %c0_82] : memref<8x32xf32, #tpu.memory_space<vmem>>, vector<8x32xf32>
    tpu.vector_store %arg19[%c0_81, %c0_82], %194 {strides = array<i32>} : memref<8x32xf32, #tpu.memory_space<vmem>>, vector<8x32xf32>,
    %c1_i32 = arith.constant 1 : i32
    %196 = arith.cmpi eq, %arg1, %c1_i32 : i32
    %197 = arith.extui %196 : i1 to i32
    %c0_i32_83 = arith.constant 0 : i32
    %198 = arith.cmpi ne, %197, %c0_i32_83 : i32
    scf.if %198 {
      %199 = vector.shape_cast %194 : vector<8x32xf32> to vector<1x8x32xf32>
      %200 = vector.extract_strided_slice %199 {offsets = [0, 0, 0], sizes = [1, 1, 32], strides = [1, 1, 1]} : vector<1x8x32xf32> to vector<1x1x32xf32>
      %201 = vector.shape_cast %200 : vector<1x1x32xf32> to vector<1x32xf32>
      %202 = arith.truncf %201 : vector<1x32xf32> to vector<1x32xbf16>
      %c0_84 = arith.constant 0 : index
      %c0_85 = arith.constant 0 : index
      %203 = vector.load %arg16[%c0_84, %c0_85] : memref<32x128xbf16, #tpu.memory_space<vmem>>, vector<32x128xbf16>
      %cst_86 = arith.constant dense<0.000000e+00> : vector<1x128xf32>
      %204 = tpu.matmul %202, %203, %cst_86 {dimension_numbers = #tpu.dot_dimension_numbers<[1], [0], [0], [1], [0, 0, 1, 1], [], []>} : vector<1x32xbf16>, vector<32x128xbf16>, vector<1x128xf32> -> vector<1x128xf32>
      %c0_87 = arith.constant 0 : index
      %c0_88 = arith.constant 0 : index
      %205 = vector.load %arg17[%c0_87, %c0_88] : memref<1x128xf32, #tpu.memory_space<vmem>>, vector<1x128xf32>
      %206 = arith.addf %204, %205 : vector<1x128xf32>
      %cst_89 = arith.constant dense<0xFF800000> : vector<1xf32>
      %207 = vector.multi_reduction <maximumf>, %206, %cst_89 [1] : vector<1x128xf32> to vector<1xf32>
      %208 = vector.shape_cast %207 : vector<1xf32> to vector<1x1xf32>
      %209 = vector.broadcast %208 : vector<1x1xf32> to vector<1x128xf32>
      %210 = arith.subf %206, %209 : vector<1x128xf32>
      %211 = math.exp %210 : vector<1x128xf32>
      %cst_90 = arith.constant dense<0.000000e+00> : vector<1xf32>
      %212 = vector.multi_reduction <add>, %211, %cst_90 [1] : vector<1x128xf32> to vector<1xf32>
      %213 = vector.shape_cast %212 : vector<1xf32> to vector<1x1xf32>
      %214 = math.log %213 : vector<1x1xf32>
      %215 = arith.addf %208, %214 : vector<1x1xf32>
      %216 = vector.broadcast %215 : vector<1x1xf32> to vector<1x128xf32>
      %217 = arith.subf %206, %216 : vector<1x128xf32>
      %c0_91 = arith.constant 0 : index
      %c0_92 = arith.constant 0 : index
      %c0_93 = arith.constant 0 : index
      %218 = vector.load %arg18[%c0_91, %c0_92, %c0_93] : memref<1x1x128xf32, #tpu.memory_space<vmem>>, vector<1x1x128xf32>
      %219 = vector.shape_cast %218 : vector<1x1x128xf32> to vector<1x128xf32>
      %220 = vector.shape_cast %217 : vector<1x128xf32> to vector<1x1x128xf32>
      tpu.vector_store %arg18[%c0_91, %c0_92, %c0_93], %220 {strides = array<i32>} : memref<1x1x128xf32, #tpu.memory_space<vmem>>, vector<1x1x128xf32>,
    } else {
    }
    return
  }
  func.func @transform_0(%arg0: i32, %arg1: i32) -> (i32, i32, i32) {
    %c0_i32 = arith.constant 0 : i32
    %c0_i32_0 = arith.constant 0 : i32
    %c0_i32_1 = arith.constant 0 : i32
    return %arg0, %c0_i32, %c0_i32_0 : i32, i32, i32
  }
  func.func @transform_1(%arg0: i32, %arg1: i32) -> (i32, i32, i32) {
    %c0_i32 = arith.constant 0 : i32
    %c0_i32_0 = arith.constant 0 : i32
    %c0_i32_1 = arith.constant 0 : i32
    return %arg0, %c0_i32, %c0_i32_0 : i32, i32, i32
  }
  func.func @transform_2(%arg0: i32, %arg1: i32) -> (i32, i32, i32) {
    %c0_i32 = arith.constant 0 : i32
    %c0_i32_0 = arith.constant 0 : i32
    %c0_i32_1 = arith.constant 0 : i32
    return %arg1, %c0_i32, %c0_i32_0 : i32, i32, i32
  }
  func.func @transform_3(%arg0: i32, %arg1: i32) -> (i32, i32, i32) {
    %c0_i32 = arith.constant 0 : i32
    %c0_i32_0 = arith.constant 0 : i32
    %c0_i32_1 = arith.constant 0 : i32
    return %arg1, %c0_i32, %c0_i32_0 : i32, i32, i32
  }
  func.func @transform_4(%arg0: i32, %arg1: i32) -> (i32, i32, i32) {
    %c0_i32 = arith.constant 0 : i32
    %c0_i32_0 = arith.constant 0 : i32
    %c0_i32_1 = arith.constant 0 : i32
    return %arg1, %c0_i32, %c0_i32_0 : i32, i32, i32
  }
  func.func @transform_5(%arg0: i32, %arg1: i32) -> (i32, i32, i32) {
    %c0_i32 = arith.constant 0 : i32
    %c0_i32_0 = arith.constant 0 : i32
    %c0_i32_1 = arith.constant 0 : i32
    return %arg1, %c0_i32, %c0_i32_0 : i32, i32, i32
  }
  func.func @transform_6(%arg0: i32, %arg1: i32) -> (i32, i32, i32) {
    %c0_i32 = arith.constant 0 : i32
    %c0_i32_0 = arith.constant 0 : i32
    %c0_i32_1 = arith.constant 0 : i32
    return %arg1, %c0_i32, %c0_i32_0 : i32, i32, i32
  }
  func.func @transform_7(%arg0: i32, %arg1: i32) -> (i32, i32, i32) {
    %c0_i32 = arith.constant 0 : i32
    %c0_i32_0 = arith.constant 0 : i32
    %c0_i32_1 = arith.constant 0 : i32
    return %arg1, %c0_i32, %c0_i32_0 : i32, i32, i32
  }
  func.func @transform_8(%arg0: i32, %arg1: i32) -> (i32, i32, i32) {
    %c0_i32 = arith.constant 0 : i32
    %c0_i32_0 = arith.constant 0 : i32
    %c0_i32_1 = arith.constant 0 : i32
    return %arg1, %c0_i32, %c0_i32_0 : i32, i32, i32
  }
  func.func @transform_9(%arg0: i32, %arg1: i32) -> (i32, i32, i32) {
    %c0_i32 = arith.constant 0 : i32
    %c0_i32_0 = arith.constant 0 : i32
    %c0_i32_1 = arith.constant 0 : i32
    return %arg1, %c0_i32, %c0_i32_0 : i32, i32, i32
  }
  func.func @transform_10(%arg0: i32, %arg1: i32) -> (i32, i32, i32) {
    %c0_i32 = arith.constant 0 : i32
    %c0_i32_0 = arith.constant 0 : i32
    %c0_i32_1 = arith.constant 0 : i32
    return %arg1, %c0_i32, %c0_i32_0 : i32, i32, i32
  }
  func.func @transform_11(%arg0: i32, %arg1: i32) -> (i32, i32, i32) {
    %c0_i32 = arith.constant 0 : i32
    %c0_i32_0 = arith.constant 0 : i32
    %c0_i32_1 = arith.constant 0 : i32
    return %arg1, %c0_i32, %c0_i32_0 : i32, i32, i32
  }
  func.func @transform_12(%arg0: i32, %arg1: i32) -> (i32, i32, i32) {
    %c0_i32 = arith.constant 0 : i32
    %c0_i32_0 = arith.constant 0 : i32
    %c0_i32_1 = arith.constant 0 : i32
    return %arg1, %c0_i32, %c0_i32_0 : i32, i32, i32
  }
  func.func @transform_13(%arg0: i32, %arg1: i32) -> (i32, i32, i32) {
    %c0_i32 = arith.constant 0 : i32
    %c0_i32_0 = arith.constant 0 : i32
    %c0_i32_1 = arith.constant 0 : i32
    return %arg1, %c0_i32, %c0_i32_0 : i32, i32, i32
  }
  func.func @transform_14(%arg0: i32, %arg1: i32) -> (i32, i32) {
    %c0_i32 = arith.constant 0 : i32
    %c0_i32_0 = arith.constant 0 : i32
    %c0_i32_1 = arith.constant 0 : i32
    return %c0_i32, %c0_i32_0 : i32, i32
  }
  func.func @transform_15(%arg0: i32, %arg1: i32) -> (i32, i32) {
    %c0_i32 = arith.constant 0 : i32
    %c0_i32_0 = arith.constant 0 : i32
    %c0_i32_1 = arith.constant 0 : i32
    return %c0_i32, %c0_i32_0 : i32, i32
  }
  func.func @transform_16(%arg0: i32, %arg1: i32) -> (i32, i32, i32) {
    %c0_i32 = arith.constant 0 : i32
    %c0_i32_0 = arith.constant 0 : i32
    %c0_i32_1 = arith.constant 0 : i32
    return %arg0, %c0_i32, %c0_i32_0 : i32, i32, i32
  }
}

</mosaic_0001>

<llo_original>
// kernel: tpu_custom_call.1
$region0: #{tpu_custom_call.1}
  #allocation0 [shape = 'u32[]', space=smem, size = 0x4, offset = 0x4, fixed_abs, tag = 'smem constant byte address 0x4 - core index']
  #allocation1 [shape = 'u32[144,128]{1,0:T(1,128)}', space=vmem, size = 0x12000, scoped, tag = 'internal scratch']
  #allocation2 [shape = 'f32[8,32]{1,0:T(8,128)}', space=vmem, size = 0x1000, scoped, tag = 'scratch operand']
  #allocation3 [shape = 'f32[8,32]{1,0:T(8,128)}', space=vmem, size = 0x1000, scoped, tag = 'scratch operand']
  %s0 = inlined_call_operand.hbm [shape: s32[2,1,8], index: 0, kind: input, shape index: {}]
  %s1 = inlined_call_operand.hbm [shape: f32[2,8,32], index: 1, kind: input, shape index: {}]
  %s2 = inlined_call_operand.vmem [shape: bf16[2,32,96], index: 2, kind: input, shape index: {}]
  %s3 = inlined_call_operand.hbm [shape: f32[2,1,96], index: 3, kind: input, shape index: {}]
  %s4 = inlined_call_operand.vmem [shape: bf16[2,32,32], index: 4, kind: input, shape index: {}]
  %s5 = inlined_call_operand.hbm [shape: f32[2,1,32], index: 5, kind: input, shape index: {}]
  %s6 = inlined_call_operand.hbm [shape: f32[2,1,32], index: 6, kind: input, shape index: {}]
  %s7 = inlined_call_operand.hbm [shape: f32[2,1,32], index: 7, kind: input, shape index: {}]
  %s8 = inlined_call_operand.vmem [shape: bf16[2,32,64], index: 8, kind: input, shape index: {}]
  %s9 = inlined_call_operand.hbm [shape: f32[2,1,64], index: 9, kind: input, shape index: {}]
  %s10 = inlined_call_operand.vmem [shape: bf16[2,64,32], index: 10, kind: input, shape index: {}]
  %s11 = inlined_call_operand.vmem [shape: f32[2,1,32], index: 11, kind: input, shape index: {}]
  %s12 = inlined_call_operand.vmem [shape: f32[2,1,32], index: 12, kind: input, shape index: {}]
  %s13 = inlined_call_operand.vmem [shape: f32[2,1,32], index: 13, kind: input, shape index: {}]
  %s14 = inlined_call_operand.vmem [shape: bf16[32,128], index: 14, kind: input, shape index: {}]
  %s15 = inlined_call_operand.vmem [shape: f32[1,128], index: 15, kind: input, shape index: {}]
  %s16 = inlined_call_operand.hbm [shape: f32[2,1,128], index: 16, kind: output, shape index: {}]
  %s17 = sld [smem:[#allocation0]]
  $region133: #{tpu_custom_call.1} parent=0
    _
  %s19 = ssub.s32 1, %s17
  %s20 = scalar_select 0, %s19, %s17
  $region1: #{tpu_custom_call.1} parent=0
    #allocation4 [shape = 'u8[1024]{0}', space=vmem, size = 0x400, scoped, tag = 'input window, operand 0']
    #allocation5 [shape = 's32[2]{0}', space=sflag, size = 0x8, scoped, tag = 'scoped memory for tpu_custom_call.1']
    #allocation6 [shape = 's32[2]{0}', space=sflag, size = 0x8, scoped, tag = 'scoped memory for tpu_custom_call.1']
    #allocation7 [shape = 'u8[8192]{0}', space=vmem, size = 0x2000, scoped, tag = 'input window, operand 1']
    #allocation8 [shape = 's32[2]{0}', space=sflag, size = 0x8, scoped, tag = 'scoped memory for tpu_custom_call.1']
    #allocation9 [shape = 'u8[1024]{0}', space=vmem, size = 0x400, scoped, tag = 'input window, operand 3']
    #allocation10 [shape = 'u8[1024]{0}', space=vmem, size = 0x400, scoped, tag = 'input window, operand 5']
    #allocation11 [shape = 's32[2]{0}', space=sflag, size = 0x8, scoped, tag = 'scoped memory for tpu_custom_call.1']
    #allocation12 [shape = 'u8[1024]{0}', space=vmem, size = 0x400, scoped, tag = 'input window, operand 6']
    #allocation13 [shape = 'u8[1024]{0}', space=vmem, size = 0x400, scoped, tag = 'input window, operand 7']
    #allocation14 [shape = 's32[2]{0}', space=sflag, size = 0x8, scoped, tag = 'scoped memory for tpu_custom_call.1']
    #allocation15 [shape = 'u8[1024]{0}', space=vmem, size = 0x400, scoped, tag = 'input window, operand 9']
    #allocation16 [shape = 'u8[1024]{0}', space=vmem, size = 0x400, scoped, tag = 'output window, operand 0']
    %21 = vsyncpa [#allocation5], 0
    %s22 = scalar_lea.sflag [#allocation5], 1
    %23 = vsyncpa %s22, 0
    %24 = vsyncpa [#allocation8], 0
    %s25 = scalar_lea.sflag [#allocation8], 1
    %26 = vsyncpa %s25, 0
    %27 = vsyncpa [#allocation11], 0
    %s28 = scalar_lea.sflag [#allocation11], 1
    %29 = vsyncpa %s28, 0
    %30 = vsyncpa [#allocation14], 0
    %s31 = scalar_lea.sflag [#allocation14], 1
    %32 = vsyncpa %s31, 0
    %33 = vsyncpa [#allocation6], 0
    %s34 = scalar_lea.sflag [#allocation6], 1
    %35 = vsyncpa %s34, 0
    loop: start=0, step=1, limit=6
    $region2: #{tpu_custom_call.1} parent=1 // loop_pre_header
      _
    $region3: #{tpu_custom_call.1} parent=1 // loop_header
      %s37 = sphi 0, %s41
      %p38 = scmp.ge.s32.totalorder %s37, 6
      %s44 = sphi 0, %s56
      %s45 = sphi 0, %s52
      %s46 = sphi 0, %s44
      %s47 = sphi 0, %s45
      %s48 = sphi 0, %s46
      %s49 = sphi 0, %s47
      %s59 = sphi 0, %s61
      %s62 = sphi 0, %s59
      %s63 = sphi 0, %s62
      %s79 = sphi 0, %s63
      %s85 = sphi 0, %s87
      %s88 = sphi 0, %s85
      %s89 = sphi 0, %s88
      %s105 = sphi 0, %s89
      %s111 = sphi 0, %s113
      %s114 = sphi 0, %s111
      %s115 = sphi 0, %s114
      %s131 = sphi 0, %s115
      %s137 = sphi 0, %s139
      %s140 = sphi 0, %s137
      %s141 = sphi 0, %s140
      %s157 = sphi 0, %s141
      %s163 = sphi 0, %s165
      %s166 = sphi 0, %s163
      %s167 = sphi 0, %s166
      %s183 = sphi 0, %s167
      %s189 = sphi 0, %s191
      %s192 = sphi 0, %s189
      %s193 = sphi 0, %s192
      %s209 = sphi 0, %s193
      %s215 = sphi 0, %s217
      %s218 = sphi 0, %s215
      %s219 = sphi 0, %s218
      %s235 = sphi 0, %s219
      %s241 = sphi 0, %s243
      %s244 = sphi 0, %s241
      %s245 = sphi 0, %s244
      %s261 = sphi 0, %s245
      %s267 = sphi 0, %s269
      %s270 = sphi 0, %s267
      %s271 = sphi 0, %s270
      %s287 = sphi 0, %s271
      %s293 = sphi 0, %s295
      %s296 = sphi 0, %s293
      %s297 = sphi 0, %s296
      %s313 = sphi 0, %s297
      %s319 = sphi 0, %s321
      %s322 = sphi 0, %s319
      %s323 = sphi 0, %s322
      %s339 = sphi 0, %s323
      %s345 = sphi 0, %s347
      %s348 = sphi 0, %s345
      %s349 = sphi 0, %s348
      %s365 = sphi 0, %s349
      %s371 = sphi 0, %s373
      %s374 = sphi 0, %s371
      %s375 = sphi 0, %s374
      %s391 = sphi 0, %s375
      %s397 = sphi 0, %s399
      %s400 = sphi 0, %s397
      %s401 = sphi 0, %s400
      %s417 = sphi 0, %s401
      %s421 = sphi 0, %s421
      %s423 = sphi 0, %s421
      %s424 = sphi 0, %s423
      %s438 = sphi 0, %s424
      %s442 = sphi 0, %s442
      %s444 = sphi 0, %s442
      %s445 = sphi 0, %s444
      %s459 = sphi 0, %s445
      %s465 = sphi 0, %s467
      %s468 = sphi 0, %s465
      %s469 = sphi 0, %s468
      %s485 = sphi 0, %s469
    $region4: #{tpu_custom_call.1} parent=1 // loop_header_branch
      %40 = sbr.rel (%p38) target = $region8
    $region5: #{tpu_custom_call.1} parent=1 // loop_body
      %s42 = ssub.s32 %s37, 1
      %s43 = ssub.s32 %s37, 2
      %s50 = sadd.s32 1, %s45
      %p51 = scmp.ge.s32.totalorder %s50, 2
      %s52 = scalar_select %p51, 0, %s50
      %s53 = sadd.s32 1, %s44
      %s54 = scalar_select %p51, %s53, %s44
      %p55 = scmp.ge.s32.totalorder %s54, 2
      %s56 = scalar_select %p55, 0, %s54
      %s57 = ssub.s32 %s44, %s56
      %p58 = scmp.eq.s32.totalorder %s57, 0
      %s60 = sadd.s32 %s59, 1
      %s61 = scalar_select %p58, %s59, %s60
      %p64 = pneg %p58
      %p65 = scmp.eq.s32.totalorder %s37, 3
      %p66 = por %p64, %p65
      %p67 = scmp.ne.s32.totalorder %s59, %s62
      %p68 = scmp.eq.s32.totalorder %s37, 0
      %p69 = por %p67, %p68
      %p70 = scmp.ne.s32.totalorder %s59, %s62
      %p71 = scmp.eq.s32.totalorder %s42, 3
      %p72 = por %p70, %p71
      %p73 = scmp.ne.s32.totalorder %s62, %s63
      %p74 = scmp.eq.s32.totalorder %s42, 0
      %p75 = por %p73, %p74
      %p76 = scmp.ne.s32.totalorder %s62, %s63
      %p77 = scmp.eq.s32.totalorder %s43, 3
      %p78 = por %p76, %p77
      %p80 = scmp.ne.s32.totalorder %s63, %s79
      %p81 = scmp.eq.s32.totalorder %s43, 0
      %p82 = por %p80, %p81
      %s83 = ssub.s32 %s44, %s56
      %p84 = scmp.eq.s32.totalorder %s83, 0
      %s86 = sadd.s32 %s85, 1
      %s87 = scalar_select %p84, %s85, %s86
      %p90 = pneg %p84
      %p91 = scmp.eq.s32.totalorder %s37, 3
      %p92 = por %p90, %p91
      %p93 = scmp.ne.s32.totalorder %s85, %s88
      %p94 = scmp.eq.s32.totalorder %s37, 0
      %p95 = por %p93, %p94
      %p96 = scmp.ne.s32.totalorder %s85, %s88
      %p97 = scmp.eq.s32.totalorder %s42, 3
      %p98 = por %p96, %p97
      %p99 = scmp.ne.s32.totalorder %s88, %s89
      %p100 = scmp.eq.s32.totalorder %s42, 0
      %p101 = por %p99, %p100
      %p102 = scmp.ne.s32.totalorder %s88, %s89
      %p103 = scmp.eq.s32.totalorder %s43, 3
      %p104 = por %p102, %p103
      %p106 = scmp.ne.s32.totalorder %s89, %s105
      %p107 = scmp.eq.s32.totalorder %s43, 0
      %p108 = por %p106, %p107
      %s109 = ssub.s32 %s45, %s52
      %p110 = scmp.eq.s32.totalorder %s109, 0
      %s112 = sadd.s32 %s111, 1
      %s113 = scalar_select %p110, %s111, %s112
      %p116 = pneg %p110
      %p117 = scmp.eq.s32.totalorder %s37, 3
      %p118 = por %p116, %p117
      %p119 = scmp.ne.s32.totalorder %s111, %s114
      %p120 = scmp.eq.s32.totalorder %s37, 0
      %p121 = por %p119, %p120
      %p122 = scmp.ne.s32.totalorder %s111, %s114
      %p123 = scmp.eq.s32.totalorder %s42, 3
      %p124 = por %p122, %p123
      %p125 = scmp.ne.s32.totalorder %s114, %s115
      %p126 = scmp.eq.s32.totalorder %s42, 0
      %p127 = por %p125, %p126
      %p128 = scmp.ne.s32.totalorder %s114, %s115
      %p129 = scmp.eq.s32.totalorder %s43, 3
      %p130 = por %p128, %p129
      %p132 = scmp.ne.s32.totalorder %s115, %s131
      %p133 = scmp.eq.s32.totalorder %s43, 0
      %p134 = por %p132, %p133
      %s135 = ssub.s32 %s45, %s52
      %p136 = scmp.eq.s32.totalorder %s135, 0
      %s138 = sadd.s32 %s137, 1
      %s139 = scalar_select %p136, %s137, %s138
      %p142 = pneg %p136
      %p143 = scmp.eq.s32.totalorder %s37, 3
      %p144 = por %p142, %p143
      %p145 = scmp.ne.s32.totalorder %s137, %s140
      %p146 = scmp.eq.s32.totalorder %s37, 0
      %p147 = por %p145, %p146
      %p148 = scmp.ne.s32.totalorder %s137, %s140
      %p149 = scmp.eq.s32.totalorder %s42, 3
      %p150 = por %p148, %p149
      %p151 = scmp.ne.s32.totalorder %s140, %s141
      %p152 = scmp.eq.s32.totalorder %s42, 0
      %p153 = por %p151, %p152
      %p154 = scmp.ne.s32.totalorder %s140, %s141
      %p155 = scmp.eq.s32.totalorder %s43, 3
      %p156 = por %p154, %p155
      %p158 = scmp.ne.s32.totalorder %s141, %s157
      %p159 = scmp.eq.s32.totalorder %s43, 0
      %p160 = por %p158, %p159
      %s161 = ssub.s32 %s45, %s52
      %p162 = scmp.eq.s32.totalorder %s161, 0
      %s164 = sadd.s32 %s163, 1
      %s165 = scalar_select %p162, %s163, %s164
      %p168 = pneg %p162
      %p169 = scmp.eq.s32.totalorder %s37, 3
      %p170 = por %p168, %p169
      %p171 = scmp.ne.s32.totalorder %s163, %s166
      %p172 = scmp.eq.s32.totalorder %s37, 0
      %p173 = por %p171, %p172
      %p174 = scmp.ne.s32.totalorder %s163, %s166
      %p175 = scmp.eq.s32.totalorder %s42, 3
      %p176 = por %p174, %p175
      %p177 = scmp.ne.s32.totalorder %s166, %s167
      %p178 = scmp.eq.s32.totalorder %s42, 0
      %p179 = por %p177, %p178
      %p180 = scmp.ne.s32.totalorder %s166, %s167
      %p181 = scmp.eq.s32.totalorder %s43, 3
      %p182 = por %p180, %p181
      %p184 = scmp.ne.s32.totalorder %s167, %s183
      %p185 = scmp.eq.s32.totalorder %s43, 0
      %p186 = por %p184, %p185
      %s187 = ssub.s32 %s45, %s52
      %p188 = scmp.eq.s32.totalorder %s187, 0
      %s190 = sadd.s32 %s189, 1
      %s191 = scalar_select %p188, %s189, %s190
      %p194 = pneg %p188
      %p195 = scmp.eq.s32.totalorder %s37, 3
      %p196 = por %p194, %p195
      %p197 = scmp.ne.s32.totalorder %s189, %s192
      %p198 = scmp.eq.s32.totalorder %s37, 0
      %p199 = por %p197, %p198
      %p200 = scmp.ne.s32.totalorder %s189, %s192
      %p201 = scmp.eq.s32.totalorder %s42, 3
      %p202 = por %p200, %p201
      %p203 = scmp.ne.s32.totalorder %s192, %s193
      %p204 = scmp.eq.s32.totalorder %s42, 0
      %p205 = por %p203, %p204
      %p206 = scmp.ne.s32.totalorder %s192, %s193
      %p207 = scmp.eq.s32.totalorder %s43, 3
      %p208 = por %p206, %p207
      %p210 = scmp.ne.s32.totalorder %s193, %s209
      %p211 = scmp.eq.s32.totalorder %s43, 0
      %p212 = por %p210, %p211
      %s213 = ssub.s32 %s45, %s52
      %p214 = scmp.eq.s32.totalorder %s213, 0
      %s216 = sadd.s32 %s215, 1
      %s217 = scalar_select %p214, %s215, %s216
      %p220 = pneg %p214
      %p221 = scmp.eq.s32.totalorder %s37, 3
      %p222 = por %p220, %p221
      %p223 = scmp.ne.s32.totalorder %s215, %s218
      %p224 = scmp.eq.s32.totalorder %s37, 0
      %p225 = por %p223, %p224
      %p226 = scmp.ne.s32.totalorder %s215, %s218
      %p227 = scmp.eq.s32.totalorder %s42, 3
      %p228 = por %p226, %p227
      %p229 = scmp.ne.s32.totalorder %s218, %s219
      %p230 = scmp.eq.s32.totalorder %s42, 0
      %p231 = por %p229, %p230
      %p232 = scmp.ne.s32.totalorder %s218, %s219
      %p233 = scmp.eq.s32.totalorder %s43, 3
      %p234 = por %p232, %p233
      %p236 = scmp.ne.s32.totalorder %s219, %s235
      %p237 = scmp.eq.s32.totalorder %s43, 0
      %p238 = por %p236, %p237
      %s239 = ssub.s32 %s45, %s52
      %p240 = scmp.eq.s32.totalorder %s239, 0
      %s242 = sadd.s32 %s241, 1
      %s243 = scalar_select %p240, %s241, %s242
      %p246 = pneg %p240
      %p247 = scmp.eq.s32.totalorder %s37, 3
      %p248 = por %p246, %p247
      %p249 = scmp.ne.s32.totalorder %s241, %s244
      %p250 = scmp.eq.s32.totalorder %s37, 0
      %p251 = por %p249, %p250
      %p252 = scmp.ne.s32.totalorder %s241, %s244
      %p253 = scmp.eq.s32.totalorder %s42, 3
      %p254 = por %p252, %p253
      %p255 = scmp.ne.s32.totalorder %s244, %s245
      %p256 = scmp.eq.s32.totalorder %s42, 0
      %p257 = por %p255, %p256
      %p258 = scmp.ne.s32.totalorder %s244, %s245
      %p259 = scmp.eq.s32.totalorder %s43, 3
      %p260 = por %p258, %p259
      %p262 = scmp.ne.s32.totalorder %s245, %s261
      %p263 = scmp.eq.s32.totalorder %s43, 0
      %p264 = por %p262, %p263
      %s265 = ssub.s32 %s45, %s52
      %p266 = scmp.eq.s32.totalorder %s265, 0
      %s268 = sadd.s32 %s267, 1
      %s269 = scalar_select %p266, %s267, %s268
      %p272 = pneg %p266
      %p273 = scmp.eq.s32.totalorder %s37, 3
      %p274 = por %p272, %p273
      %p275 = scmp.ne.s32.totalorder %s267, %s270
      %p276 = scmp.eq.s32.totalorder %s37, 0
      %p277 = por %p275, %p276
      %p278 = scmp.ne.s32.totalorder %s267, %s270
      %p279 = scmp.eq.s32.totalorder %s42, 3
      %p280 = por %p278, %p279
      %p281 = scmp.ne.s32.totalorder %s270, %s271
      %p282 = scmp.eq.s32.totalorder %s42, 0
      %p283 = por %p281, %p282
      %p284 = scmp.ne.s32.totalorder %s270, %s271
      %p285 = scmp.eq.s32.totalorder %s43, 3
      %p286 = por %p284, %p285
      %p288 = scmp.ne.s32.totalorder %s271, %s287
      %p289 = scmp.eq.s32.totalorder %s43, 0
      %p290 = por %p288, %p289
      %s291 = ssub.s32 %s45, %s52
      %p292 = scmp.eq.s32.totalorder %s291, 0
      %s294 = sadd.s32 %s293, 1
      %s295 = scalar_select %p292, %s293, %s294
      %p298 = pneg %p292
      %p299 = scmp.eq.s32.totalorder %s37, 3
      %p300 = por %p298, %p299
      %p301 = scmp.ne.s32.totalorder %s293, %s296
      %p302 = scmp.eq.s32.totalorder %s37, 0
      %p303 = por %p301, %p302
      %p304 = scmp.ne.s32.totalorder %s293, %s296
      %p305 = scmp.eq.s32.totalorder %s42, 3
      %p306 = por %p304, %p305
      %p307 = scmp.ne.s32.totalorder %s296, %s297
      %p308 = scmp.eq.s32.totalorder %s42, 0
      %p309 = por %p307, %p308
      %p310 = scmp.ne.s32.totalorder %s296, %s297
      %p311 = scmp.eq.s32.totalorder %s43, 3
      %p312 = por %p310, %p311
      %p314 = scmp.ne.s32.totalorder %s297, %s313
      %p315 = scmp.eq.s32.totalorder %s43, 0
      %p316 = por %p314, %p315
      %s317 = ssub.s32 %s45, %s52
      %p318 = scmp.eq.s32.totalorder %s317, 0
      %s320 = sadd.s32 %s319, 1
      %s321 = scalar_select %p318, %s319, %s320
      %p324 = pneg %p318
      %p325 = scmp.eq.s32.totalorder %s37, 3
      %p326 = por %p324, %p325
      %p327 = scmp.ne.s32.totalorder %s319, %s322
      %p328 = scmp.eq.s32.totalorder %s37, 0
      %p329 = por %p327, %p328
      %p330 = scmp.ne.s32.totalorder %s319, %s322
      %p331 = scmp.eq.s32.totalorder %s42, 3
      %p332 = por %p330, %p331
      %p333 = scmp.ne.s32.totalorder %s322, %s323
      %p334 = scmp.eq.s32.totalorder %s42, 0
      %p335 = por %p333, %p334
      %p336 = scmp.ne.s32.totalorder %s322, %s323
      %p337 = scmp.eq.s32.totalorder %s43, 3
      %p338 = por %p336, %p337
      %p340 = scmp.ne.s32.totalorder %s323, %s339
      %p341 = scmp.eq.s32.totalorder %s43, 0
      %p342 = por %p340, %p341
      %s343 = ssub.s32 %s45, %s52
      %p344 = scmp.eq.s32.totalorder %s343, 0
      %s346 = sadd.s32 %s345, 1
      %s347 = scalar_select %p344, %s345, %s346
      %p350 = pneg %p344
      %p351 = scmp.eq.s32.totalorder %s37, 3
      %p352 = por %p350, %p351
      %p353 = scmp.ne.s32.totalorder %s345, %s348
      %p354 = scmp.eq.s32.totalorder %s37, 0
      %p355 = por %p353, %p354
      %p356 = scmp.ne.s32.totalorder %s345, %s348
      %p357 = scmp.eq.s32.totalorder %s42, 3
      %p358 = por %p356, %p357
      %p359 = scmp.ne.s32.totalorder %s348, %s349
      %p360 = scmp.eq.s32.totalorder %s42, 0
      %p361 = por %p359, %p360
      %p362 = scmp.ne.s32.totalorder %s348, %s349
      %p363 = scmp.eq.s32.totalorder %s43, 3
      %p364 = por %p362, %p363
      %p366 = scmp.ne.s32.totalorder %s349, %s365
      %p367 = scmp.eq.s32.totalorder %s43, 0
      %p368 = por %p366, %p367
      %s369 = ssub.s32 %s45, %s52
      %p370 = scmp.eq.s32.totalorder %s369, 0
      %s372 = sadd.s32 %s371, 1
      %s373 = scalar_select %p370, %s371, %s372
      %p376 = pneg %p370
      %p377 = scmp.eq.s32.totalorder %s37, 3
      %p378 = por %p376, %p377
      %p379 = scmp.ne.s32.totalorder %s371, %s374
      %p380 = scmp.eq.s32.totalorder %s37, 0
      %p381 = por %p379, %p380
      %p382 = scmp.ne.s32.totalorder %s371, %s374
      %p383 = scmp.eq.s32.totalorder %s42, 3
      %p384 = por %p382, %p383
      %p385 = scmp.ne.s32.totalorder %s374, %s375
      %p386 = scmp.eq.s32.totalorder %s42, 0
      %p387 = por %p385, %p386
      %p388 = scmp.ne.s32.totalorder %s374, %s375
      %p389 = scmp.eq.s32.totalorder %s43, 3
      %p390 = por %p388, %p389
      %p392 = scmp.ne.s32.totalorder %s375, %s391
      %p393 = scmp.eq.s32.totalorder %s43, 0
      %p394 = por %p392, %p393
      %s395 = ssub.s32 %s45, %s52
      %p396 = scmp.eq.s32.totalorder %s395, 0
      %s398 = sadd.s32 %s397, 1
      %s399 = scalar_select %p396, %s397, %s398
      %p402 = pneg %p396
      %p403 = scmp.eq.s32.totalorder %s37, 3
      %p404 = por %p402, %p403
      %p405 = scmp.ne.s32.totalorder %s397, %s400
      %p406 = scmp.eq.s32.totalorder %s37, 0
      %p407 = por %p405, %p406
      %p408 = scmp.ne.s32.totalorder %s397, %s400
      %p409 = scmp.eq.s32.totalorder %s42, 3
      %p410 = por %p408, %p409
      %p411 = scmp.ne.s32.totalorder %s400, %s401
      %p412 = scmp.eq.s32.totalorder %s42, 0
      %p413 = por %p411, %p412
      %p414 = scmp.ne.s32.totalorder %s400, %s401
      %p415 = scmp.eq.s32.totalorder %s43, 3
      %p416 = por %p414, %p415
      %p418 = scmp.ne.s32.totalorder %s401, %s417
      %p419 = scmp.eq.s32.totalorder %s43, 0
      %p420 = por %p418, %p419
      %s422 = sadd.s32 %s421, 1
      %p425 = scmp.eq.s32.totalorder %s37, 3
      %p426 = scmp.ne.s32.totalorder %s421, %s423
      %p427 = scmp.eq.s32.totalorder %s37, 0
      %p428 = por %p426, %p427
      %p429 = scmp.ne.s32.totalorder %s421, %s423
      %p430 = scmp.eq.s32.totalorder %s42, 3
      %p431 = por %p429, %p430
      %p432 = scmp.ne.s32.totalorder %s423, %s424
      %p433 = scmp.eq.s32.totalorder %s42, 0
      %p434 = por %p432, %p433
      %p435 = scmp.ne.s32.totalorder %s423, %s424
      %p436 = scmp.eq.s32.totalorder %s43, 3
      %p437 = por %p435, %p436
      %p439 = scmp.ne.s32.totalorder %s424, %s438
      %p440 = scmp.eq.s32.totalorder %s43, 0
      %p441 = por %p439, %p440
      %s443 = sadd.s32 %s442, 1
      %p446 = scmp.eq.s32.totalorder %s37, 3
      %p447 = scmp.ne.s32.totalorder %s442, %s444
      %p448 = scmp.eq.s32.totalorder %s37, 0
      %p449 = por %p447, %p448
      %p450 = scmp.ne.s32.totalorder %s442, %s444
      %p451 = scmp.eq.s32.totalorder %s42, 3
      %p452 = por %p450, %p451
      %p453 = scmp.ne.s32.totalorder %s444, %s445
      %p454 = scmp.eq.s32.totalorder %s42, 0
      %p455 = por %p453, %p454
      %p456 = scmp.ne.s32.totalorder %s444, %s445
      %p457 = scmp.eq.s32.totalorder %s43, 3
      %p458 = por %p456, %p457
      %p460 = scmp.ne.s32.totalorder %s445, %s459
      %p461 = scmp.eq.s32.totalorder %s43, 0
      %p462 = por %p460, %p461
      %s463 = ssub.s32 %s44, %s56
      %p464 = scmp.eq.s32.totalorder %s463, 0
      %s466 = sadd.s32 %s465, 1
      %s467 = scalar_select %p464, %s465, %s466
      %p470 = pneg %p464
      %p471 = scmp.eq.s32.totalorder %s37, 3
      %p472 = por %p470, %p471
      %p473 = scmp.ne.s32.totalorder %s465, %s468
      %p474 = scmp.eq.s32.totalorder %s37, 0
      %p475 = por %p473, %p474
      %p476 = scmp.ne.s32.totalorder %s465, %s468
      %p477 = scmp.eq.s32.totalorder %s42, 3
      %p478 = por %p476, %p477
      %p479 = scmp.ne.s32.totalorder %s468, %s469
      %p480 = scmp.eq.s32.totalorder %s42, 0
      %p481 = por %p479, %p480
      %p482 = scmp.ne.s32.totalorder %s468, %s469
      %p483 = scmp.eq.s32.totalorder %s43, 3
      %p484 = por %p482, %p483
      %p486 = scmp.ne.s32.totalorder %s469, %s485
      %p487 = scmp.eq.s32.totalorder %s43, 0
      %p488 = por %p486, %p487
      %p489 = scmp.le.s32.totalorder 1, %s37
      %p490 = scmp.lt.s32.totalorder %s37, 5
      %p491 = pnand %p489, %p490
      %p492 = pneg %p491
      // Predicated region
      $region9: #{tpu_custom_call.1} parent=5 // pred_check
        _
      $region10: #{tpu_custom_call.1} parent=5 // pred_check_branch
        %494 = sbr.rel (%p491) target = $region12
      $region11: #{tpu_custom_call.1} parent=5 // pred_region
        %s495 = ssub.s32 %s37, 1
        // Predicated region
        $region13: #{tpu_custom_call.1} parent=11 // pred_check
          %p496 = pneg %p434
        $region14: #{tpu_custom_call.1} parent=11 // pred_check_branch
          %498 = sbr.rel (%p496) target = $region16
        $region15: #{tpu_custom_call.1} parent=11 // pred_region
          _
        $region16: #{tpu_custom_call.1} parent=11 // pred_fallthru
          _
        // Predicated region
        $region17: #{tpu_custom_call.1} parent=11 // pred_check
          %p499 = pneg %p455
        $region18: #{tpu_custom_call.1} parent=11 // pred_check_branch
          %501 = sbr.rel (%p499) target = $region20
        $region19: #{tpu_custom_call.1} parent=11 // pred_region
          _
        $region20: #{tpu_custom_call.1} parent=11 // pred_fallthru
          _
      $region12: #{tpu_custom_call.1} parent=5 // pred_fallthru
        _
      %p502 = scmp.lt.s32.totalorder %s37, 4
      // Predicated region
      $region21: #{tpu_custom_call.1} parent=5 // pred_check
        %p503 = pneg %p502
      $region22: #{tpu_custom_call.1} parent=5 // pred_check_branch
        %505 = sbr.rel (%p503) target = $region24
      $region23: #{tpu_custom_call.1} parent=5 // pred_region
        // Predicated region
        $region25: #{tpu_custom_call.1} parent=23 // pred_check
          %p506 = pneg %p69
        $region26: #{tpu_custom_call.1} parent=23 // pred_check_branch
          %508 = sbr.rel (%p506) target = $region28
        $region27: #{tpu_custom_call.1} parent=23 // pred_region
          %s509 = sand.u32 %s59, 1
          %s510 = scalar_lea.sflag [#allocation5], %s509
          %s511 = sand.u32 %s59, 1
          %s512 = scalar_lea.vmem [#allocation4], %s511
          %s514 = ssub.s32 16, 16
          %515 = vsyncadd %s510, %s514
          %s516 = smul.addr %s44, 16
          %s517 = scalar_lea.hbm %s0, %s516
          %s519 = sshll.u32 %s512, 4
          %s520 = int_to_ptr.vmem [resolvable:$true] %s519
          %522 = dma.hbm_to_vmem [thread:$0]  %s517, 16, %s520, %s510
        $region28: #{tpu_custom_call.1} parent=23 // pred_fallthru
          _
        // Predicated region
        $region29: #{tpu_custom_call.1} parent=23 // pred_check
          %p523 = pneg %p95
        $region30: #{tpu_custom_call.1} parent=23 // pred_check_branch
          %525 = sbr.rel (%p523) target = $region32
        $region31: #{tpu_custom_call.1} parent=23 // pred_region
          %s526 = sand.u32 %s37, 1
          %s527 = scalar_lea.sflag [#allocation8], %s526
          %s528 = sand.u32 %s85, 1
          %s529 = smul.addr %s528, 8
          %s530 = scalar_lea.vmem [#allocation7], %s529
          %s532 = ssub.s32 128, 128
          %533 = vsyncadd %s527, %s532
          %s534 = smul.addr %s44, 128
          %s535 = scalar_lea.hbm %s1, %s534
          %s537 = sshll.u32 %s530, 4
          %s538 = int_to_ptr.vmem [resolvable:$true] %s537
          %540 = dma.hbm_to_vmem [thread:$0]  %s535, 128, %s538, %s527
        $region32: #{tpu_custom_call.1} parent=23 // pred_fallthru
          _
        // Predicated region
        $region33: #{tpu_custom_call.1} parent=23 // pred_check
          %p541 = pneg %p121
        $region34: #{tpu_custom_call.1} parent=23 // pred_check_branch
          %543 = sbr.rel (%p541) target = $region36
        $region35: #{tpu_custom_call.1} parent=23 // pred_region
          %p544 = scmp.lt.s32.totalorder %s45, 1
          %s545 = scalar_select %p544, %s45, 1
          %s546 = smul.addr %s545, 4
          %s547 = smul.addr %s546, 4
          %s548 = scalar_lea.vmem %s2, %s547
        $region36: #{tpu_custom_call.1} parent=23 // pred_fallthru
          _
        // Predicated region
        $region37: #{tpu_custom_call.1} parent=23 // pred_check
          %p549 = pneg %p147
        $region38: #{tpu_custom_call.1} parent=23 // pred_check_branch
          %551 = sbr.rel (%p549) target = $region40
        $region39: #{tpu_custom_call.1} parent=23 // pred_region
          %s552 = sand.u32 %s37, 1
          %s553 = scalar_lea.sflag [#allocation8], %s552
          %s554 = sand.u32 %s137, 1
          %s555 = scalar_lea.vmem [#allocation9], %s554
          %s557 = ssub.s32 16, 16
          %558 = vsyncadd %s553, %s557
          %s559 = smul.addr %s45, 16
          %s560 = scalar_lea.hbm %s3, %s559
          %s562 = sshll.u32 %s555, 4
          %s563 = int_to_ptr.vmem [resolvable:$true] %s562
          %565 = dma.hbm_to_vmem [thread:$0]  %s560, 16, %s563, %s553
        $region40: #{tpu_custom_call.1} parent=23 // pred_fallthru
          _
        // Predicated region
        $region41: #{tpu_custom_call.1} parent=23 // pred_check
          %p566 = pneg %p173
        $region42: #{tpu_custom_call.1} parent=23 // pred_check_branch
          %568 = sbr.rel (%p566) target = $region44
        $region43: #{tpu_custom_call.1} parent=23 // pred_region
          %p569 = scmp.lt.s32.totalorder %s45, 1
          %s570 = scalar_select %p569, %s45, 1
          %s571 = smul.addr %s570, 4
          %s572 = smul.addr %s571, 4
          %s573 = scalar_lea.vmem %s4, %s572
        $region44: #{tpu_custom_call.1} parent=23 // pred_fallthru
          _
        // Predicated region
        $region45: #{tpu_custom_call.1} parent=23 // pred_check
          %p574 = pneg %p199
        $region46: #{tpu_custom_call.1} parent=23 // pred_check_branch
          %576 = sbr.rel (%p574) target = $region48
        $region47: #{tpu_custom_call.1} parent=23 // pred_region
          %s577 = sand.u32 %s37, 1
          %s578 = scalar_lea.sflag [#allocation11], %s577
          %s579 = sand.u32 %s189, 1
          %s580 = scalar_lea.vmem [#allocation10], %s579
          %s582 = ssub.s32 16, 16
          %583 = vsyncadd %s578, %s582
          %s584 = smul.addr %s45, 16
          %s585 = scalar_lea.hbm %s5, %s584
          %s587 = sshll.u32 %s580, 4
          %s588 = int_to_ptr.vmem [resolvable:$true] %s587
          %590 = dma.hbm_to_vmem [thread:$0]  %s585, 16, %s588, %s578
        $region48: #{tpu_custom_call.1} parent=23 // pred_fallthru
          _
        // Predicated region
        $region49: #{tpu_custom_call.1} parent=23 // pred_check
          %p591 = pneg %p225
        $region50: #{tpu_custom_call.1} parent=23 // pred_check_branch
          %593 = sbr.rel (%p591) target = $region52
        $region51: #{tpu_custom_call.1} parent=23 // pred_region
          %s594 = sand.u32 %s37, 1
          %s595 = scalar_lea.sflag [#allocation11], %s594
          %s596 = sand.u32 %s215, 1
          %s597 = scalar_lea.vmem [#allocation12], %s596
          %s599 = ssub.s32 16, 16
          %600 = vsyncadd %s595, %s599
          %s601 = smul.addr %s45, 16
          %s602 = scalar_lea.hbm %s6, %s601
          %s604 = sshll.u32 %s597, 4
          %s605 = int_to_ptr.vmem [resolvable:$true] %s604
          %607 = dma.hbm_to_vmem [thread:$0]  %s602, 16, %s605, %s595
        $region52: #{tpu_custom_call.1} parent=23 // pred_fallthru
          _
        // Predicated region
        $region53: #{tpu_custom_call.1} parent=23 // pred_check
          %p608 = pneg %p251
        $region54: #{tpu_custom_call.1} parent=23 // pred_check_branch
          %610 = sbr.rel (%p608) target = $region56
        $region55: #{tpu_custom_call.1} parent=23 // pred_region
          %s611 = sand.u32 %s37, 1
          %s612 = scalar_lea.sflag [#allocation14], %s611
          %s613 = sand.u32 %s241, 1
          %s614 = scalar_lea.vmem [#allocation13], %s613
          %s616 = ssub.s32 16, 16
          %617 = vsyncadd %s612, %s616
          %s618 = smul.addr %s45, 16
          %s619 = scalar_lea.hbm %s7, %s618
          %s621 = sshll.u32 %s614, 4
          %s622 = int_to_ptr.vmem [resolvable:$true] %s621
          %624 = dma.hbm_to_vmem [thread:$0]  %s619, 16, %s622, %s612
        $region56: #{tpu_custom_call.1} parent=23 // pred_fallthru
          _
        // Predicated region
        $region57: #{tpu_custom_call.1} parent=23 // pred_check
          %p625 = pneg %p277
        $region58: #{tpu_custom_call.1} parent=23 // pred_check_branch
          %627 = sbr.rel (%p625) target = $region60
        $region59: #{tpu_custom_call.1} parent=23 // pred_region
          %p628 = scmp.lt.s32.totalorder %s45, 1
          %s629 = scalar_select %p628, %s45, 1
          %s630 = smul.addr %s629, 4
          %s631 = smul.addr %s630, 4
          %s632 = scalar_lea.vmem %s8, %s631
        $region60: #{tpu_custom_call.1} parent=23 // pred_fallthru
          _
        // Predicated region
        $region61: #{tpu_custom_call.1} parent=23 // pred_check
          %p633 = pneg %p303
        $region62: #{tpu_custom_call.1} parent=23 // pred_check_branch
          %635 = sbr.rel (%p633) target = $region64
        $region63: #{tpu_custom_call.1} parent=23 // pred_region
          %s636 = sand.u32 %s37, 1
          %s637 = scalar_lea.sflag [#allocation14], %s636
          %s638 = sand.u32 %s293, 1
          %s639 = scalar_lea.vmem [#allocation15], %s638
          %s641 = ssub.s32 16, 16
          %642 = vsyncadd %s637, %s641
          %s643 = smul.addr %s45, 16
          %s644 = scalar_lea.hbm %s9, %s643
          %s646 = sshll.u32 %s639, 4
          %s647 = int_to_ptr.vmem [resolvable:$true] %s646
          %649 = dma.hbm_to_vmem [thread:$0]  %s644, 16, %s647, %s637
        $region64: #{tpu_custom_call.1} parent=23 // pred_fallthru
          _
        // Predicated region
        $region65: #{tpu_custom_call.1} parent=23 // pred_check
          %p650 = pneg %p329
        $region66: #{tpu_custom_call.1} parent=23 // pred_check_branch
          %652 = sbr.rel (%p650) target = $region68
        $region67: #{tpu_custom_call.1} parent=23 // pred_region
          %p653 = scmp.lt.s32.totalorder %s45, 1
          %s654 = scalar_select %p653, %s45, 1
          %s655 = smul.addr %s654, 8
          %s656 = smul.addr %s655, 4
          %s657 = scalar_lea.vmem %s10, %s656
        $region68: #{tpu_custom_call.1} parent=23 // pred_fallthru
          _
        // Predicated region
        $region69: #{tpu_custom_call.1} parent=23 // pred_check
          %p658 = pneg %p355
        $region70: #{tpu_custom_call.1} parent=23 // pred_check_branch
          %660 = sbr.rel (%p658) target = $region72
        $region71: #{tpu_custom_call.1} parent=23 // pred_region
          %p661 = scmp.lt.s32.totalorder %s45, 1
          %s662 = scalar_select %p661, %s45, 1
          %s663 = scalar_lea.vmem %s11, %s662
        $region72: #{tpu_custom_call.1} parent=23 // pred_fallthru
          _
        // Predicated region
        $region73: #{tpu_custom_call.1} parent=23 // pred_check
          %p664 = pneg %p381
        $region74: #{tpu_custom_call.1} parent=23 // pred_check_branch
          %666 = sbr.rel (%p664) target = $region76
        $region75: #{tpu_custom_call.1} parent=23 // pred_region
          %p667 = scmp.lt.s32.totalorder %s45, 1
          %s668 = scalar_select %p667, %s45, 1
          %s669 = scalar_lea.vmem %s12, %s668
        $region76: #{tpu_custom_call.1} parent=23 // pred_fallthru
          _
        // Predicated region
        $region77: #{tpu_custom_call.1} parent=23 // pred_check
          %p670 = pneg %p407
        $region78: #{tpu_custom_call.1} parent=23 // pred_check_branch
          %672 = sbr.rel (%p670) target = $region80
        $region79: #{tpu_custom_call.1} parent=23 // pred_region
          %p673 = scmp.lt.s32.totalorder %s45, 1
          %s674 = scalar_select %p673, %s45, 1
          %s675 = scalar_lea.vmem %s13, %s674
        $region80: #{tpu_custom_call.1} parent=23 // pred_fallthru
          _
      $region24: #{tpu_custom_call.1} parent=5 // pred_fallthru
        _
      %p676 = scmp.le.s32.totalorder 1, %s37
      %p677 = scmp.lt.s32.totalorder %s37, 5
      %p678 = pnand %p676, %p677
      %p679 = pneg %p678
      // Predicated region
      $region81: #{tpu_custom_call.1} parent=5 // pred_check
        _
      $region82: #{tpu_custom_call.1} parent=5 // pred_check_branch
        %681 = sbr.rel (%p678) target = $region84
      $region83: #{tpu_custom_call.1} parent=5 // pred_region
        %s682 = ssub.s32 %s37, 1
        %s683 = sand.u32 %s62, 1
        %s684 = scalar_lea.sflag [#allocation5], %s683
        %s685 = sand.u32 %s62, 1
        %s686 = scalar_lea.vmem [#allocation4], %s685
        // Predicated region
        $region85: #{tpu_custom_call.1} parent=83 // pred_check
          %p687 = pneg %p75
        $region86: #{tpu_custom_call.1} parent=83 // pred_check_branch
          %689 = sbr.rel (%p687) target = $region88
        $region87: #{tpu_custom_call.1} parent=83 // pred_region
          %690 = dma.done %s684, 16
        $region88: #{tpu_custom_call.1} parent=83 // pred_fallthru
          _
        %s691 = sand.u32 %s42, 1
        %s692 = scalar_lea.sflag [#allocation8], %s691
        %s693 = sand.u32 %s88, 1
        %s694 = smul.addr %s693, 8
        %s695 = scalar_lea.vmem [#allocation7], %s694
        // Predicated region
        $region89: #{tpu_custom_call.1} parent=83 // pred_check
          %p696 = pneg %p101
        $region90: #{tpu_custom_call.1} parent=83 // pred_check_branch
          %698 = sbr.rel (%p696) target = $region92
        $region91: #{tpu_custom_call.1} parent=83 // pred_region
          %699 = dma.done %s692, 128
        $region92: #{tpu_custom_call.1} parent=83 // pred_fallthru
          _
        %s700 = sand.u32 %s42, 1
        %s701 = scalar_lea.sflag [#allocation8], %s700
        %s702 = sand.u32 %s140, 1
        %s703 = scalar_lea.vmem [#allocation9], %s702
        // Predicated region
        $region93: #{tpu_custom_call.1} parent=83 // pred_check
          %p704 = pneg %p153
        $region94: #{tpu_custom_call.1} parent=83 // pred_check_branch
          %706 = sbr.rel (%p704) target = $region96
        $region95: #{tpu_custom_call.1} parent=83 // pred_region
          %707 = dma.done %s701, 16
        $region96: #{tpu_custom_call.1} parent=83 // pred_fallthru
          _
        %s708 = sand.u32 %s42, 1
        %s709 = scalar_lea.sflag [#allocation11], %s708
        %s710 = sand.u32 %s192, 1
        %s711 = scalar_lea.vmem [#allocation10], %s710
        // Predicated region
        $region97: #{tpu_custom_call.1} parent=83 // pred_check
          %p712 = pneg %p205
        $region98: #{tpu_custom_call.1} parent=83 // pred_check_branch
          %714 = sbr.rel (%p712) target = $region100
        $region99: #{tpu_custom_call.1} parent=83 // pred_region
          %715 = dma.done %s709, 16
        $region100: #{tpu_custom_call.1} parent=83 // pred_fallthru
          _
        %s716 = sand.u32 %s42, 1
        %s717 = scalar_lea.sflag [#allocation11], %s716
        %s718 = sand.u32 %s218, 1
        %s719 = scalar_lea.vmem [#allocation12], %s718
        // Predicated region
        $region101: #{tpu_custom_call.1} parent=83 // pred_check
          %p720 = pneg %p231
        $region102: #{tpu_custom_call.1} parent=83 // pred_check_branch
          %722 = sbr.rel (%p720) target = $region104
        $region103: #{tpu_custom_call.1} parent=83 // pred_region
          %723 = dma.done %s717, 16
        $region104: #{tpu_custom_call.1} parent=83 // pred_fallthru
          _
        %s724 = sand.u32 %s42, 1
        %s725 = scalar_lea.sflag [#allocation14], %s724
        %s726 = sand.u32 %s244, 1
        %s727 = scalar_lea.vmem [#allocation13], %s726
        // Predicated region
        $region105: #{tpu_custom_call.1} parent=83 // pred_check
          %p728 = pneg %p257
        $region106: #{tpu_custom_call.1} parent=83 // pred_check_branch
          %730 = sbr.rel (%p728) target = $region108
        $region107: #{tpu_custom_call.1} parent=83 // pred_region
          %731 = dma.done %s725, 16
        $region108: #{tpu_custom_call.1} parent=83 // pred_fallthru
          _
        %s732 = sand.u32 %s42, 1
        %s733 = scalar_lea.sflag [#allocation14], %s732
        %s734 = sand.u32 %s296, 1
        %s735 = scalar_lea.vmem [#allocation15], %s734
        // Predicated region
        $region109: #{tpu_custom_call.1} parent=83 // pred_check
          %p736 = pneg %p309
        $region110: #{tpu_custom_call.1} parent=83 // pred_check_branch
          %738 = sbr.rel (%p736) target = $region112
        $region111: #{tpu_custom_call.1} parent=83 // pred_region
          %739 = dma.done %s733, 16
        $region112: #{tpu_custom_call.1} parent=83 // pred_fallthru
          _
        %s740 = sand.u32 %s62, 1
        %s741 = scalar_lea.sflag [#allocation5], %s740
        %s742 = sand.u32 %s62, 1
        %s743 = scalar_lea.vmem [#allocation4], %s742
        %p744 = pneg %p75
        %p745 = pneg %p72
        %s746 = sand.u32 %s42, 1
        %s747 = scalar_lea.sflag [#allocation8], %s746
        %s748 = sand.u32 %s88, 1
        %s749 = smul.addr %s748, 8
        %s750 = scalar_lea.vmem [#allocation7], %s749
        %p751 = pneg %p101
        %p752 = pneg %p98
        %p753 = scmp.lt.s32.totalorder %s47, 1
        %s754 = scalar_select %p753, %s47, 1
        %s755 = smul.addr %s754, 4
        %s756 = smul.addr %s755, 4
        %s757 = scalar_lea.vmem %s2, %s756
        %p758 = pneg %p127
        %p759 = pneg %p124
        %s760 = sand.u32 %s42, 1
        %s761 = scalar_lea.sflag [#allocation8], %s760
        %s762 = sand.u32 %s140, 1
        %s763 = scalar_lea.vmem [#allocation9], %s762
        %p764 = pneg %p153
        %p765 = pneg %p150
        %p766 = scmp.lt.s32.totalorder %s47, 1
        %s767 = scalar_select %p766, %s47, 1
        %s768 = smul.addr %s767, 4
        %s769 = smul.addr %s768, 4
        %s770 = scalar_lea.vmem %s4, %s769
        %p771 = pneg %p179
        %p772 = pneg %p176
        %s773 = sand.u32 %s42, 1
        %s774 = scalar_lea.sflag [#allocation11], %s773
        %s775 = sand.u32 %s192, 1
        %s776 = scalar_lea.vmem [#allocation10], %s775
        %p777 = pneg %p205
        %p778 = pneg %p202
        %s779 = sand.u32 %s42, 1
        %s780 = scalar_lea.sflag [#allocation11], %s779
        %s781 = sand.u32 %s218, 1
        %s782 = scalar_lea.vmem [#allocation12], %s781
        %p783 = pneg %p231
        %p784 = pneg %p228
        %s785 = sand.u32 %s42, 1
        %s786 = scalar_lea.sflag [#allocation14], %s785
        %s787 = sand.u32 %s244, 1
        %s788 = scalar_lea.vmem [#allocation13], %s787
        %p789 = pneg %p257
        %p790 = pneg %p254
        %p791 = scmp.lt.s32.totalorder %s47, 1
        %s792 = scalar_select %p791, %s47, 1
        %s793 = smul.addr %s792, 4
        %s794 = smul.addr %s793, 4
        %s795 = scalar_lea.vmem %s8, %s794
        %p796 = pneg %p283
        %p797 = pneg %p280
        %s798 = sand.u32 %s42, 1
        %s799 = scalar_lea.sflag [#allocation14], %s798
        %s800 = sand.u32 %s296, 1
        %s801 = scalar_lea.vmem [#allocation15], %s800
        %p802 = pneg %p309
        %p803 = pneg %p306
        %p804 = scmp.lt.s32.totalorder %s47, 1
        %s805 = scalar_select %p804, %s47, 1
        %s806 = smul.addr %s805, 8
        %s807 = smul.addr %s806, 4
        %s808 = scalar_lea.vmem %s10, %s807
        %p809 = pneg %p335
        %p810 = pneg %p332
        %p811 = scmp.lt.s32.totalorder %s47, 1
        %s812 = scalar_select %p811, %s47, 1
        %s813 = scalar_lea.vmem %s11, %s812
        %p814 = pneg %p361
        %p815 = pneg %p358
        %p816 = scmp.lt.s32.totalorder %s47, 1
        %s817 = scalar_select %p816, %s47, 1
        %s818 = scalar_lea.vmem %s12, %s817
        %p819 = pneg %p387
        %p820 = pneg %p384
        %p821 = scmp.lt.s32.totalorder %s47, 1
        %s822 = scalar_select %p821, %s47, 1
        %s823 = scalar_lea.vmem %s13, %s822
        %p824 = pneg %p413
        %p825 = pneg %p410
        %p826 = pneg %p434
        %p827 = pneg %p431
        %p828 = pneg %p455
        %p829 = pneg %p452
        %p830 = pneg %p481
        %p831 = pneg %p478
        %s832 = sand.u32 %s468, 1
        %s833 = scalar_lea.sflag [#allocation6], %s832
        %s834 = sand.u32 %s468, 1
        %s835 = scalar_lea.vmem [#allocation16], %s834
        %p836 = scmp.lt.s32.totalorder %s47, 1
        %s837 = scalar_select %p836, %s47, 1
        %s838 = smul.addr %s837, 4
        %s839 = smul.addr %s838, 4
        %s840 = scalar_lea.vmem %s2, %s839
        %p841 = scmp.lt.s32.totalorder %s47, 1
        %s842 = scalar_select %p841, %s47, 1
        %s843 = smul.addr %s842, 4
        %s844 = smul.addr %s843, 4
        %s845 = scalar_lea.vmem %s4, %s844
        %p846 = scmp.lt.s32.totalorder %s47, 1
        %s847 = scalar_select %p846, %s47, 1
        %s848 = smul.addr %s847, 4
        %s849 = smul.addr %s848, 4
        %s850 = scalar_lea.vmem %s8, %s849
        %p851 = scmp.lt.s32.totalorder %s47, 1
        %s852 = scalar_select %p851, %s47, 1
        %s853 = smul.addr %s852, 8
        %s854 = smul.addr %s853, 4
        %s855 = scalar_lea.vmem %s10, %s854
        %p856 = scmp.lt.s32.totalorder %s47, 1
        %s857 = scalar_select %p856, %s47, 1
        %s858 = scalar_lea.vmem %s11, %s857
        %p859 = scmp.lt.s32.totalorder %s47, 1
        %s860 = scalar_select %p859, %s47, 1
        %s861 = scalar_lea.vmem %s12, %s860
        %p862 = scmp.lt.s32.totalorder %s47, 1
        %s863 = scalar_select %p862, %s47, 1
        %s864 = scalar_lea.vmem %s13, %s863
        %p866 = scmp.eq.s32.totalorder %s47, 0
        // Predicated region
        $region113: #{tpu_custom_call.1} parent=83 // pred_check
          %p867 = pneg %p866
        $region114: #{tpu_custom_call.1} parent=83 // pred_check_branch
          %869 = sbr.rel (%p867) target = $region116
        $region115: #{tpu_custom_call.1} parent=83 // pred_region
          %v870 = vld [vmem:[%s695] sm:$0xff]
          %vm871 = vcmask 261120
          %872 = vst.msk [vmem:[#allocation2] sm:$0xff] %vm871, %v870
        $region116: #{tpu_custom_call.1} parent=83 // pred_fallthru
          _
        %v873 = vld [vmem:[#allocation2] sm:$0xff]
        %v874 = vpack.c.bf16 %v873, %v873
        %v875 = vld [vmem:[%s686] sm:$0x1]
        %vm876 = vcmp.eq.s32.totalorder %v875, 0
        %v877 = vsel %vm876, -1e+30, 0.0
        %v879 = vlaneseq
        %v880 = vshrl.u32 %v879, 7
        %v881 = vsub.s32 0, %v880
        %v882 = vrot.slane %v877, %v881
        %v884 = vld [vmem:[%s840] sm:$0xf]
        %v885 = vld [vmem:[%s840 + $0x4] sm:$0xf]
        %v886 = vld [vmem:[%s840 + $0x8] sm:$0xf]
        %v887 = vld [vmem:[%s840 + $0xc] sm:$0xf]
        %v888 = vld [vmem:[%s703] sm:$0x1]
        %v890 = vlaneseq
        %v891 = vshrl.u32 %v890, 7
        %v892 = vsub.s32 0, %v891
        %v893 = vrot.slane %v888, %v892
        %v899 = vunpack.c.l.b16 %v884
        %v900 = vunpack.c.l.b16 %v885
        %v901 = vunpack.c.l.b16 %v886
        %v902 = vunpack.c.l.b16 %v887
        %v903 = vpack.c.b16 %v900, %v899
        %v904 = vpack.c.b16 %v902, %v901
        %vm907 = vcmask 261120
        %v909 = vsel %vm907, %v874, 0
        %911 = vmatprep.subr.bf16.mxu0 0
        %912 = vmatpush1.bf16.msra.mxu0 0
        %913 = vmatprep.subr.bf16.mxu0 0
        %914 = vmatpush1.bf16.msra.mxu0 0
        %915 = vmatprep.subr.bf16.mxu0 0
        %916 = vmatpush1.bf16.msra.mxu0 0
        %917 = vmatprep.subr.bf16.mxu0 0
        %918 = vmatpush1.bf16.msra.mxu0 0
        %919 = vmatprep.subr.bf16.mxu0 0
        %920 = vmatpush1.bf16.msra.mxu0 0
        %921 = vmatprep.subr.bf16.mxu0 0
        %922 = vmatpush1.bf16.msra.mxu0 0
        %923 = vmatprep.subr.bf16.mxu0 0
        %924 = vmatpush1.bf16.msra.mxu0 %v904
        %925 = vmatprep.subr.bf16.mxu0 0
        %926 = vmatpush1.bf16.msra.mxu0 %v903
        %927 = vmatprep.subr.bf16.mxu0 0
        %928 = vmatpush2.bf16.msra.mxu0 0
        %929 = vmatprep.subr.bf16.mxu0 0
        %930 = vmatpush2.bf16.msra.mxu0 0
        %931 = vmatprep.subr.bf16.mxu0 0
        %932 = vmatpush2.bf16.msra.mxu0 0
        %933 = vmatprep.subr.bf16.mxu0 0
        %934 = vmatpush2.bf16.msra.mxu0 0
        %935 = vmatprep.subr.bf16.mxu0 0
        %936 = vmatpush2.bf16.msra.mxu0 0
        %937 = vmatprep.subr.bf16.mxu0 0
        %938 = vmatpush2.bf16.msra.mxu0 0
        %939 = vmatprep.subr.bf16.mxu0 0
        %940 = vmatpush2.bf16.msra.mxu0 0
        %941 = vmatprep.subr.bf16.mxu0 0
        %942 = vmatpush2.bf16.msra.mxu0 0
        %943 = vmatprep.mubr.bf16.mxu0 0
        %944 = vmatmul.mubr.bf16.gmra.mxu0 %v909
        %v945 = vpop.f32.mrf.mxu0
        %v946 = vadd.f32 %v893, %v945
        %v947 = vpop.f32.mrf.mxu0
        %v948 = vpop.f32.mrf.mxu0
        %v949 = vpop.f32.mrf.mxu0
        %950 = vdwg.mxu0
        %952 = vrot.lane.b32.xlu0 %v946, 96
        %v953 = vpop.permute.xlu0 %952
        %vm954 = vcmask 64512
        %v955 = vsel %vm954, %v946, 0
        %v957 = vsel %vm954, %v953, 0
        %959 = vmatprep.subr.mxu0 0.0
        %960 = vmatpush1.xpose.msra.mxu0 0.0
        %961 = vmatprep.subr.mxu0 0.0
        %962 = vmatpush1.xpose.msra.mxu0 0.0
        %963 = vmatprep.subr.mxu0 0.0
        %964 = vmatpush1.xpose.msra.mxu0 0.0
        %965 = vmatprep.subr.mxu0 0.0
        %966 = vmatpush1.xpose.msra.mxu0 0.0
        %967 = vmatprep.subr.mxu0 0.0
        %968 = vmatpush1.xpose.msra.mxu0 0.0
        %969 = vmatprep.subr.mxu0 0.0
        %970 = vmatpush1.xpose.msra.mxu0 0.0
        %971 = vmatprep.subr.mxu0 0.0
        %972 = vmatpush1.xpose.msra.mxu0 0.0
        %973 = vmatprep.subr.mxu0 0.0
        %974 = vmatpush1.xpose.msra.mxu0 0.0
        %975 = vmatprep.subr.mxu0 0.0
        %976 = vmatpush1.xpose.msra.mxu0 0.0
        %977 = vmatprep.subr.mxu0 0.0
        %978 = vmatpush1.xpose.msra.mxu0 0.0
        %979 = vmatprep.subr.mxu0 0.0
        %980 = vmatpush1.xpose.msra.mxu0 0.0
        %981 = vmatprep.subr.mxu0 0.0
        %982 = vmatpush1.xpose.msra.mxu0 0.0
        %983 = vmatprep.subr.mxu0 0.0
        %984 = vmatpush1.xpose.msra.mxu0 0.0
        %985 = vmatprep.subr.mxu0 0.0
        %986 = vmatpush1.xpose.msra.mxu0 0.0
        %987 = vmatprep.subr.mxu0 0.0
        %988 = vmatpush1.xpose.msra.mxu0 0.0
        %989 = vmatprep.subr.mxu0 0.0
        %990 = vmatpush1.xpose.msra.mxu0 %v957
        %991 = vmatprep.subr.mxu0 0.0
        %992 = vmatpush2.xpose.msra.mxu0 0.0
        %993 = vmatprep.subr.mxu0 0.0
        %994 = vmatpush2.xpose.msra.mxu0 0.0
        %995 = vmatprep.subr.mxu0 0.0
        %996 = vmatpush2.xpose.msra.mxu0 0.0
        %997 = vmatprep.subr.mxu0 0.0
        %998 = vmatpush2.xpose.msra.mxu0 0.0
        %999 = vmatprep.subr.mxu0 0.0
        %1000 = vmatpush2.xpose.msra.mxu0 0.0
        %1001 = vmatprep.subr.mxu0 0.0
        %1002 = vmatpush2.xpose.msra.mxu0 0.0
        %1003 = vmatprep.subr.mxu0 0.0
        %1004 = vmatpush2.xpose.msra.mxu0 0.0
        %1005 = vmatprep.subr.mxu0 0.0
        %1006 = vmatpush2.xpose.msra.mxu0 0.0
        %1007 = vmatprep.subr.mxu0 0.0
        %1008 = vmatpush2.xpose.msra.mxu0 0.0
        %1009 = vmatprep.subr.mxu0 0.0
        %1010 = vmatpush2.xpose.msra.mxu0 0.0
        %1011 = vmatprep.subr.mxu0 0.0
        %1012 = vmatpush2.xpose.msra.mxu0 0.0
        %1013 = vmatprep.subr.mxu0 0.0
        %1014 = vmatpush2.xpose.msra.mxu0 0.0
        %1015 = vmatprep.subr.mxu0 0.0
        %1016 = vmatpush2.xpose.msra.mxu0 0.0
        %1017 = vmatprep.subr.mxu0 0.0
        %1018 = vmatpush2.xpose.msra.mxu0 0.0
        %1019 = vmatprep.subr.mxu0 0.0
        %1020 = vmatpush2.xpose.msra.mxu0 0.0
        %1021 = vmatprep.subr.mxu0 0.0
        %1022 = vmatpush2.xpose.msra.mxu0 0.0
        %1023 = vmatprep.mubr.f32.mxu0 0.0
        %1024 = vmatmul.mubr.f32.gmra.mxu0 %v955
        %v1025 = vpop.f32.mrf.mxu0
        %v1026 = vadd.f32 %v882, %v1025
        %v1027 = vpop.f32.mrf.mxu0
        %1028 = vdwg.mxu0
        %v1029 = vsel %vm954, %v1026, -inf
        %1030 = vmax.xlane.f32.xlu0 %v1029
        %v1031 = vpop.xlane.xlu0 %1030
        %v1032 = vsub.f32 %v1026, %v1031
        %v1033 = vmul.f32 %v1032, 1.442695
        %v1034 = vpow.pop %v1033
        %v1035 = vsel %vm954, %v1034, 0.0
        %1036 = vadd.xlane.f32.xlu0 %v1035
        %v1037 = vpop.xlane.xlu0 %1036
        %v1038 = vrcp.pop %v1037
        %v1039 = vmul.f32 %v1034, %v1038
        %v1040 = vpack.c.bf16 %v1039, %v1039
        %v1041 = vpack.c.bf16 %v946, %v946
        %1043 = vrot.lane.b32.xlu0 %v1041, 64
        %v1044 = vpop.permute.xlu0 %1043
        %v1046 = vsel %vm954, %v1040, 0
        %vm1048 = vcmask 1043456
        %v1050 = vsel %vm1048, %v1044, 0
        %1052 = vmatprep.subr.bf16.mxu0 0
        %1053 = vmatpush1.bf16.msra.mxu0 0
        %1054 = vmatprep.subr.bf16.mxu0 0
        %1055 = vmatpush1.bf16.msra.mxu0 0
        %1056 = vmatprep.subr.bf16.mxu0 0
        %1057 = vmatpush1.bf16.msra.mxu0 0
        %1058 = vmatprep.subr.bf16.mxu0 0
        %1059 = vmatpush1.bf16.msra.mxu0 0
        %1060 = vmatprep.subr.bf16.mxu0 0
        %1061 = vmatpush1.bf16.msra.mxu0 0
        %1062 = vmatprep.subr.bf16.mxu0 0
        %1063 = vmatpush1.bf16.msra.mxu0 0
        %1064 = vmatprep.subr.bf16.mxu0 0
        %1065 = vmatpush1.bf16.msra.mxu0 0
        %1066 = vmatprep.subr.bf16.mxu0 0
        %1067 = vmatpush1.bf16.msra.mxu0 %v1050
        %1068 = vmatprep.subr.bf16.mxu0 0
        %1069 = vmatpush2.bf16.msra.mxu0 0
        %1070 = vmatprep.subr.bf16.mxu0 0
        %1071 = vmatpush2.bf16.msra.mxu0 0
        %1072 = vmatprep.subr.bf16.mxu0 0
        %1073 = vmatpush2.bf16.msra.mxu0 0
        %1074 = vmatprep.subr.bf16.mxu0 0
        %1075 = vmatpush2.bf16.msra.mxu0 0
        %1076 = vmatprep.subr.bf16.mxu0 0
        %1077 = vmatpush2.bf16.msra.mxu0 0
        %1078 = vmatprep.subr.bf16.mxu0 0
        %1079 = vmatpush2.bf16.msra.mxu0 0
        %1080 = vmatprep.subr.bf16.mxu0 0
        %1081 = vmatpush2.bf16.msra.mxu0 0
        %1082 = vmatprep.subr.bf16.mxu0 0
        %1083 = vmatpush2.bf16.msra.mxu0 0
        %1084 = vmatprep.mubr.bf16.mxu0 0
        %1085 = vmatmul.mubr.bf16.gmra.mxu0 %v1046
        %v1086 = vpop.f32.mrf.mxu0
        %v1087 = vadd.f32 0.0, %v1086
        %v1088 = vpop.f32.mrf.mxu0
        %v1089 = vpop.f32.mrf.mxu0
        %v1090 = vpop.f32.mrf.mxu0
        %1091 = vdwg.mxu0
        %1092 = vst.msk [vmem:[#allocation3] sm:$0xff] %vm954, %v1087
        %1093 = vrot.lane.b32.xlu0 %v946, 120
        %v1094 = vpop.permute.xlu0 %1093
        %1095 = vrot.lane.b32.xlu0 %v946, 88
        %v1096 = vpop.permute.xlu0 %1095
        %v1097 = vsel %vm954, %v1094, 0
        %v1099 = vsel %vm954, %v1096, 0
        %1101 = vmatprep.subr.mxu0 0.0
        %1102 = vmatpush1.xpose.msra.mxu0 0.0
        %1103 = vmatprep.subr.mxu0 0.0
        %1104 = vmatpush1.xpose.msra.mxu0 0.0
        %1105 = vmatprep.subr.mxu0 0.0
        %1106 = vmatpush1.xpose.msra.mxu0 0.0
        %1107 = vmatprep.subr.mxu0 0.0
        %1108 = vmatpush1.xpose.msra.mxu0 0.0
        %1109 = vmatprep.subr.mxu0 0.0
        %1110 = vmatpush1.xpose.msra.mxu0 0.0
        %1111 = vmatprep.subr.mxu0 0.0
        %1112 = vmatpush1.xpose.msra.mxu0 0.0
        %1113 = vmatprep.subr.mxu0 0.0
        %1114 = vmatpush1.xpose.msra.mxu0 0.0
        %1115 = vmatprep.subr.mxu0 0.0
        %1116 = vmatpush1.xpose.msra.mxu0 0.0
        %1117 = vmatprep.subr.mxu0 0.0
        %1118 = vmatpush1.xpose.msra.mxu0 0.0
        %1119 = vmatprep.subr.mxu0 0.0
        %1120 = vmatpush1.xpose.msra.mxu0 0.0
        %1121 = vmatprep.subr.mxu0 0.0
        %1122 = vmatpush1.xpose.msra.mxu0 0.0
        %1123 = vmatprep.subr.mxu0 0.0
        %1124 = vmatpush1.xpose.msra.mxu0 0.0
        %1125 = vmatprep.subr.mxu0 0.0
        %1126 = vmatpush1.xpose.msra.mxu0 0.0
        %1127 = vmatprep.subr.mxu0 0.0
        %1128 = vmatpush1.xpose.msra.mxu0 0.0
        %1129 = vmatprep.subr.mxu0 0.0
        %1130 = vmatpush1.xpose.msra.mxu0 0.0
        %1131 = vmatprep.subr.mxu0 0.0
        %1132 = vmatpush1.xpose.msra.mxu0 %v1099
        %1133 = vmatprep.subr.mxu0 0.0
        %1134 = vmatpush2.xpose.msra.mxu0 0.0
        %1135 = vmatprep.subr.mxu0 0.0
        %1136 = vmatpush2.xpose.msra.mxu0 0.0
        %1137 = vmatprep.subr.mxu0 0.0
        %1138 = vmatpush2.xpose.msra.mxu0 0.0
        %1139 = vmatprep.subr.mxu0 0.0
        %1140 = vmatpush2.xpose.msra.mxu0 0.0
        %1141 = vmatprep.subr.mxu0 0.0
        %1142 = vmatpush2.xpose.msra.mxu0 0.0
        %1143 = vmatprep.subr.mxu0 0.0
        %1144 = vmatpush2.xpose.msra.mxu0 0.0
        %1145 = vmatprep.subr.mxu0 0.0
        %1146 = vmatpush2.xpose.msra.mxu0 0.0
        %1147 = vmatprep.subr.mxu0 0.0
        %1148 = vmatpush2.xpose.msra.mxu0 0.0
        %1149 = vmatprep.subr.mxu0 0.0
        %1150 = vmatpush2.xpose.msra.mxu0 0.0
        %1151 = vmatprep.subr.mxu0 0.0
        %1152 = vmatpush2.xpose.msra.mxu0 0.0
        %1153 = vmatprep.subr.mxu0 0.0
        %1154 = vmatpush2.xpose.msra.mxu0 0.0
        %1155 = vmatprep.subr.mxu0 0.0
        %1156 = vmatpush2.xpose.msra.mxu0 0.0
        %1157 = vmatprep.subr.mxu0 0.0
        %1158 = vmatpush2.xpose.msra.mxu0 0.0
        %1159 = vmatprep.subr.mxu0 0.0
        %1160 = vmatpush2.xpose.msra.mxu0 0.0
        %1161 = vmatprep.subr.mxu0 0.0
        %1162 = vmatpush2.xpose.msra.mxu0 0.0
        %1163 = vmatprep.subr.mxu0 0.0
        %1164 = vmatpush2.xpose.msra.mxu0 0.0
        %1165 = vmatprep.mubr.f32.mxu0 0.0
        %1166 = vmatmul.mubr.f32.gmra.mxu0 %v1097
        %v1167 = vpop.f32.mrf.mxu0
        %v1168 = vadd.f32 %v882, %v1167
        %v1169 = vpop.f32.mrf.mxu0
        %1170 = vdwg.mxu0
        %v1171 = vsel %vm954, %v1168, -inf
        %1172 = vmax.xlane.f32.xlu0 %v1171
        %v1173 = vpop.xlane.xlu0 %1172
        %v1174 = vsub.f32 %v1168, %v1173
        %v1175 = vmul.f32 %v1174, 1.442695
        %v1176 = vpow.pop %v1175
        %v1177 = vsel %vm954, %v1176, 0.0
        %1178 = vadd.xlane.f32.xlu0 %v1177
        %v1179 = vpop.xlane.xlu0 %1178
        %v1180 = vrcp.pop %v1179
        %v1181 = vmul.f32 %v1176, %v1180
        %v1182 = vpack.c.bf16 %v1181, %v1181
        %1183 = vrot.lane.b32.xlu0 %v1041, 56
        %v1184 = vpop.permute.xlu0 %1183
        %v1186 = vsel %vm954, %v1182, 0
        %v1189 = vsel %vm1048, %v1184, 0
        %1191 = vmatprep.subr.bf16.mxu0 0
        %1192 = vmatpush1.bf16.msra.mxu0 0
        %1193 = vmatprep.subr.bf16.mxu0 0
        %1194 = vmatpush1.bf16.msra.mxu0 0
        %1195 = vmatprep.subr.bf16.mxu0 0
        %1196 = vmatpush1.bf16.msra.mxu0 0
        %1197 = vmatprep.subr.bf16.mxu0 0
        %1198 = vmatpush1.bf16.msra.mxu0 0
        %1199 = vmatprep.subr.bf16.mxu0 0
        %1200 = vmatpush1.bf16.msra.mxu0 0
        %1201 = vmatprep.subr.bf16.mxu0 0
        %1202 = vmatpush1.bf16.msra.mxu0 0
        %1203 = vmatprep.subr.bf16.mxu0 0
        %1204 = vmatpush1.bf16.msra.mxu0 0
        %1205 = vmatprep.subr.bf16.mxu0 0
        %1206 = vmatpush1.bf16.msra.mxu0 %v1189
        %1207 = vmatprep.subr.bf16.mxu0 0
        %1208 = vmatpush2.bf16.msra.mxu0 0
        %1209 = vmatprep.subr.bf16.mxu0 0
        %1210 = vmatpush2.bf16.msra.mxu0 0
        %1211 = vmatprep.subr.bf16.mxu0 0
        %1212 = vmatpush2.bf16.msra.mxu0 0
        %1213 = vmatprep.subr.bf16.mxu0 0
        %1214 = vmatpush2.bf16.msra.mxu0 0
        %1215 = vmatprep.subr.bf16.mxu0 0
        %1216 = vmatpush2.bf16.msra.mxu0 0
        %1217 = vmatprep.subr.bf16.mxu0 0
        %1218 = vmatpush2.bf16.msra.mxu0 0
        %1219 = vmatprep.subr.bf16.mxu0 0
        %1220 = vmatpush2.bf16.msra.mxu0 0
        %1221 = vmatprep.subr.bf16.mxu0 0
        %1222 = vmatpush2.bf16.msra.mxu0 0
        %1223 = vmatprep.mubr.bf16.mxu0 0
        %1224 = vmatmul.mubr.bf16.gmra.mxu0 %v1186
        %v1225 = vpop.f32.mrf.mxu0
        %v1226 = vadd.f32 0.0, %v1225
        %v1227 = vpop.f32.mrf.mxu0
        %v1228 = vpop.f32.mrf.mxu0
        %v1229 = vpop.f32.mrf.mxu0
        %1230 = vdwg.mxu0
        %1232 = vrot.lane.b32.xlu0 %v1226, 8
        %v1233 = vpop.permute.xlu0 %1232
        %vm1235 = vcmask 130112
        %1236 = vst.msk [vmem:[#allocation3] sm:$0xff] %vm1235, %v1233
        %1237 = vrot.lane.b32.xlu0 %v946, 112
        %v1238 = vpop.permute.xlu0 %1237
        %1239 = vrot.lane.b32.xlu0 %v946, 80
        %v1240 = vpop.permute.xlu0 %1239
        %v1241 = vsel %vm954, %v1238, 0
        %v1243 = vsel %vm954, %v1240, 0
        %1245 = vmatprep.subr.mxu0 0.0
        %1246 = vmatpush1.xpose.msra.mxu0 0.0
        %1247 = vmatprep.subr.mxu0 0.0
        %1248 = vmatpush1.xpose.msra.mxu0 0.0
        %1249 = vmatprep.subr.mxu0 0.0
        %1250 = vmatpush1.xpose.msra.mxu0 0.0
        %1251 = vmatprep.subr.mxu0 0.0
        %1252 = vmatpush1.xpose.msra.mxu0 0.0
        %1253 = vmatprep.subr.mxu0 0.0
        %1254 = vmatpush1.xpose.msra.mxu0 0.0
        %1255 = vmatprep.subr.mxu0 0.0
        %1256 = vmatpush1.xpose.msra.mxu0 0.0
        %1257 = vmatprep.subr.mxu0 0.0
        %1258 = vmatpush1.xpose.msra.mxu0 0.0
        %1259 = vmatprep.subr.mxu0 0.0
        %1260 = vmatpush1.xpose.msra.mxu0 0.0
        %1261 = vmatprep.subr.mxu0 0.0
        %1262 = vmatpush1.xpose.msra.mxu0 0.0
        %1263 = vmatprep.subr.mxu0 0.0
        %1264 = vmatpush1.xpose.msra.mxu0 0.0
        %1265 = vmatprep.subr.mxu0 0.0
        %1266 = vmatpush1.xpose.msra.mxu0 0.0
        %1267 = vmatprep.subr.mxu0 0.0
        %1268 = vmatpush1.xpose.msra.mxu0 0.0
        %1269 = vmatprep.subr.mxu0 0.0
        %1270 = vmatpush1.xpose.msra.mxu0 0.0
        %1271 = vmatprep.subr.mxu0 0.0
        %1272 = vmatpush1.xpose.msra.mxu0 0.0
        %1273 = vmatprep.subr.mxu0 0.0
        %1274 = vmatpush1.xpose.msra.mxu0 0.0
        %1275 = vmatprep.subr.mxu0 0.0
        %1276 = vmatpush1.xpose.msra.mxu0 %v1243
        %1277 = vmatprep.subr.mxu0 0.0
        %1278 = vmatpush2.xpose.msra.mxu0 0.0
        %1279 = vmatprep.subr.mxu0 0.0
        %1280 = vmatpush2.xpose.msra.mxu0 0.0
        %1281 = vmatprep.subr.mxu0 0.0
        %1282 = vmatpush2.xpose.msra.mxu0 0.0
        %1283 = vmatprep.subr.mxu0 0.0
        %1284 = vmatpush2.xpose.msra.mxu0 0.0
        %1285 = vmatprep.subr.mxu0 0.0
        %1286 = vmatpush2.xpose.msra.mxu0 0.0
        %1287 = vmatprep.subr.mxu0 0.0
        %1288 = vmatpush2.xpose.msra.mxu0 0.0
        %1289 = vmatprep.subr.mxu0 0.0
        %1290 = vmatpush2.xpose.msra.mxu0 0.0
        %1291 = vmatprep.subr.mxu0 0.0
        %1292 = vmatpush2.xpose.msra.mxu0 0.0
        %1293 = vmatprep.subr.mxu0 0.0
        %1294 = vmatpush2.xpose.msra.mxu0 0.0
        %1295 = vmatprep.subr.mxu0 0.0
        %1296 = vmatpush2.xpose.msra.mxu0 0.0
        %1297 = vmatprep.subr.mxu0 0.0
        %1298 = vmatpush2.xpose.msra.mxu0 0.0
        %1299 = vmatprep.subr.mxu0 0.0
        %1300 = vmatpush2.xpose.msra.mxu0 0.0
        %1301 = vmatprep.subr.mxu0 0.0
        %1302 = vmatpush2.xpose.msra.mxu0 0.0
        %1303 = vmatprep.subr.mxu0 0.0
        %1304 = vmatpush2.xpose.msra.mxu0 0.0
        %1305 = vmatprep.subr.mxu0 0.0
        %1306 = vmatpush2.xpose.msra.mxu0 0.0
        %1307 = vmatprep.subr.mxu0 0.0
        %1308 = vmatpush2.xpose.msra.mxu0 0.0
        %1309 = vmatprep.mubr.f32.mxu0 0.0
        %1310 = vmatmul.mubr.f32.gmra.mxu0 %v1241
        %v1311 = vpop.f32.mrf.mxu0
        %v1312 = vadd.f32 %v882, %v1311
        %v1313 = vpop.f32.mrf.mxu0
        %1314 = vdwg.mxu0
        %v1315 = vsel %vm954, %v1312, -inf
        %1316 = vmax.xlane.f32.xlu0 %v1315
        %v1317 = vpop.xlane.xlu0 %1316
        %v1318 = vsub.f32 %v1312, %v1317
        %v1319 = vmul.f32 %v1318, 1.442695
        %v1320 = vpow.pop %v1319
        %v1321 = vsel %vm954, %v1320, 0.0
        %1322 = vadd.xlane.f32.xlu0 %v1321
        %v1323 = vpop.xlane.xlu0 %1322
        %v1324 = vrcp.pop %v1323
        %v1325 = vmul.f32 %v1320, %v1324
        %v1326 = vpack.c.bf16 %v1325, %v1325
        %1327 = vrot.lane.b32.xlu0 %v1041, 48
        %v1328 = vpop.permute.xlu0 %1327
        %v1330 = vsel %vm954, %v1326, 0
        %v1333 = vsel %vm1048, %v1328, 0
        %1335 = vmatprep.subr.bf16.mxu0 0
        %1336 = vmatpush1.bf16.msra.mxu0 0
        %1337 = vmatprep.subr.bf16.mxu0 0
        %1338 = vmatpush1.bf16.msra.mxu0 0
        %1339 = vmatprep.subr.bf16.mxu0 0
        %1340 = vmatpush1.bf16.msra.mxu0 0
        %1341 = vmatprep.subr.bf16.mxu0 0
        %1342 = vmatpush1.bf16.msra.mxu0 0
        %1343 = vmatprep.subr.bf16.mxu0 0
        %1344 = vmatpush1.bf16.msra.mxu0 0
        %1345 = vmatprep.subr.bf16.mxu0 0
        %1346 = vmatpush1.bf16.msra.mxu0 0
        %1347 = vmatprep.subr.bf16.mxu0 0
        %1348 = vmatpush1.bf16.msra.mxu0 0
        %1349 = vmatprep.subr.bf16.mxu0 0
        %1350 = vmatpush1.bf16.msra.mxu0 %v1333
        %1351 = vmatprep.subr.bf16.mxu0 0
        %1352 = vmatpush2.bf16.msra.mxu0 0
        %1353 = vmatprep.subr.bf16.mxu0 0
        %1354 = vmatpush2.bf16.msra.mxu0 0
        %1355 = vmatprep.subr.bf16.mxu0 0
        %1356 = vmatpush2.bf16.msra.mxu0 0
        %1357 = vmatprep.subr.bf16.mxu0 0
        %1358 = vmatpush2.bf16.msra.mxu0 0
        %1359 = vmatprep.subr.bf16.mxu0 0
        %1360 = vmatpush2.bf16.msra.mxu0 0
        %1361 = vmatprep.subr.bf16.mxu0 0
        %1362 = vmatpush2.bf16.msra.mxu0 0
        %1363 = vmatprep.subr.bf16.mxu0 0
        %1364 = vmatpush2.bf16.msra.mxu0 0
        %1365 = vmatprep.subr.bf16.mxu0 0
        %1366 = vmatpush2.bf16.msra.mxu0 0
        %1367 = vmatprep.mubr.bf16.mxu0 0
        %1368 = vmatmul.mubr.bf16.gmra.mxu0 %v1330
        %v1369 = vpop.f32.mrf.mxu0
        %v1370 = vadd.f32 0.0, %v1369
        %v1371 = vpop.f32.mrf.mxu0
        %v1372 = vpop.f32.mrf.mxu0
        %v1373 = vpop.f32.mrf.mxu0
        %1374 = vdwg.mxu0
        %1376 = vrot.lane.b32.xlu0 %v1370, 16
        %v1377 = vpop.permute.xlu0 %1376
        %vm1379 = vcmask 195712
        %1380 = vst.msk [vmem:[#allocation3] sm:$0xff] %vm1379, %v1377
        %1381 = vrot.lane.b32.xlu0 %v946, 104
        %v1382 = vpop.permute.xlu0 %1381
        %1383 = vrot.lane.b32.xlu0 %v946, 72
        %v1384 = vpop.permute.xlu0 %1383
        %v1385 = vsel %vm954, %v1382, 0
        %v1387 = vsel %vm954, %v1384, 0
        %1389 = vmatprep.subr.mxu0 0.0
        %1390 = vmatpush1.xpose.msra.mxu0 0.0
        %1391 = vmatprep.subr.mxu0 0.0
        %1392 = vmatpush1.xpose.msra.mxu0 0.0
        %1393 = vmatprep.subr.mxu0 0.0
        %1394 = vmatpush1.xpose.msra.mxu0 0.0
        %1395 = vmatprep.subr.mxu0 0.0
        %1396 = vmatpush1.xpose.msra.mxu0 0.0
        %1397 = vmatprep.subr.mxu0 0.0
        %1398 = vmatpush1.xpose.msra.mxu0 0.0
        %1399 = vmatprep.subr.mxu0 0.0
        %1400 = vmatpush1.xpose.msra.mxu0 0.0
        %1401 = vmatprep.subr.mxu0 0.0
        %1402 = vmatpush1.xpose.msra.mxu0 0.0
        %1403 = vmatprep.subr.mxu0 0.0
        %1404 = vmatpush1.xpose.msra.mxu0 0.0
        %1405 = vmatprep.subr.mxu0 0.0
        %1406 = vmatpush1.xpose.msra.mxu0 0.0
        %1407 = vmatprep.subr.mxu0 0.0
        %1408 = vmatpush1.xpose.msra.mxu0 0.0
        %1409 = vmatprep.subr.mxu0 0.0
        %1410 = vmatpush1.xpose.msra.mxu0 0.0
        %1411 = vmatprep.subr.mxu0 0.0
        %1412 = vmatpush1.xpose.msra.mxu0 0.0
        %1413 = vmatprep.subr.mxu0 0.0
        %1414 = vmatpush1.xpose.msra.mxu0 0.0
        %1415 = vmatprep.subr.mxu0 0.0
        %1416 = vmatpush1.xpose.msra.mxu0 0.0
        %1417 = vmatprep.subr.mxu0 0.0
        %1418 = vmatpush1.xpose.msra.mxu0 0.0
        %1419 = vmatprep.subr.mxu0 0.0
        %1420 = vmatpush1.xpose.msra.mxu0 %v1387
        %1421 = vmatprep.subr.mxu0 0.0
        %1422 = vmatpush2.xpose.msra.mxu0 0.0
        %1423 = vmatprep.subr.mxu0 0.0
        %1424 = vmatpush2.xpose.msra.mxu0 0.0
        %1425 = vmatprep.subr.mxu0 0.0
        %1426 = vmatpush2.xpose.msra.mxu0 0.0
        %1427 = vmatprep.subr.mxu0 0.0
        %1428 = vmatpush2.xpose.msra.mxu0 0.0
        %1429 = vmatprep.subr.mxu0 0.0
        %1430 = vmatpush2.xpose.msra.mxu0 0.0
        %1431 = vmatprep.subr.mxu0 0.0
        %1432 = vmatpush2.xpose.msra.mxu0 0.0
        %1433 = vmatprep.subr.mxu0 0.0
        %1434 = vmatpush2.xpose.msra.mxu0 0.0
        %1435 = vmatprep.subr.mxu0 0.0
        %1436 = vmatpush2.xpose.msra.mxu0 0.0
        %1437 = vmatprep.subr.mxu0 0.0
        %1438 = vmatpush2.xpose.msra.mxu0 0.0
        %1439 = vmatprep.subr.mxu0 0.0
        %1440 = vmatpush2.xpose.msra.mxu0 0.0
        %1441 = vmatprep.subr.mxu0 0.0
        %1442 = vmatpush2.xpose.msra.mxu0 0.0
        %1443 = vmatprep.subr.mxu0 0.0
        %1444 = vmatpush2.xpose.msra.mxu0 0.0
        %1445 = vmatprep.subr.mxu0 0.0
        %1446 = vmatpush2.xpose.msra.mxu0 0.0
        %1447 = vmatprep.subr.mxu0 0.0
        %1448 = vmatpush2.xpose.msra.mxu0 0.0
        %1449 = vmatprep.subr.mxu0 0.0
        %1450 = vmatpush2.xpose.msra.mxu0 0.0
        %1451 = vmatprep.subr.mxu0 0.0
        %1452 = vmatpush2.xpose.msra.mxu0 0.0
        %1453 = vmatprep.mubr.f32.mxu0 0.0
        %1454 = vmatmul.mubr.f32.gmra.mxu0 %v1385
        %v1455 = vpop.f32.mrf.mxu0
        %v1456 = vadd.f32 %v882, %v1455
        %v1457 = vpop.f32.mrf.mxu0
        %1458 = vdwg.mxu0
        %v1459 = vsel %vm954, %v1456, -inf
        %1460 = vmax.xlane.f32.xlu0 %v1459
        %v1461 = vpop.xlane.xlu0 %1460
        %v1462 = vsub.f32 %v1456, %v1461
        %v1463 = vmul.f32 %v1462, 1.442695
        %v1464 = vpow.pop %v1463
        %v1465 = vsel %vm954, %v1464, 0.0
        %1466 = vadd.xlane.f32.xlu0 %v1465
        %v1467 = vpop.xlane.xlu0 %1466
        %v1468 = vrcp.pop %v1467
        %v1469 = vmul.f32 %v1464, %v1468
        %v1470 = vpack.c.bf16 %v1469, %v1469
        %1471 = vrot.lane.b32.xlu0 %v1041, 40
        %v1472 = vpop.permute.xlu0 %1471
        %v1474 = vsel %vm954, %v1470, 0
        %v1477 = vsel %vm1048, %v1472, 0
        %1479 = vmatprep.subr.bf16.mxu0 0
        %1480 = vmatpush1.bf16.msra.mxu0 0
        %1481 = vmatprep.subr.bf16.mxu0 0
        %1482 = vmatpush1.bf16.msra.mxu0 0
        %1483 = vmatprep.subr.bf16.mxu0 0
        %1484 = vmatpush1.bf16.msra.mxu0 0
        %1485 = vmatprep.subr.bf16.mxu0 0
        %1486 = vmatpush1.bf16.msra.mxu0 0
        %1487 = vmatprep.subr.bf16.mxu0 0
        %1488 = vmatpush1.bf16.msra.mxu0 0
        %1489 = vmatprep.subr.bf16.mxu0 0
        %1490 = vmatpush1.bf16.msra.mxu0 0
        %1491 = vmatprep.subr.bf16.mxu0 0
        %1492 = vmatpush1.bf16.msra.mxu0 0
        %1493 = vmatprep.subr.bf16.mxu0 0
        %1494 = vmatpush1.bf16.msra.mxu0 %v1477
        %1495 = vmatprep.subr.bf16.mxu0 0
        %1496 = vmatpush2.bf16.msra.mxu0 0
        %1497 = vmatprep.subr.bf16.mxu0 0
        %1498 = vmatpush2.bf16.msra.mxu0 0
        %1499 = vmatprep.subr.bf16.mxu0 0
        %1500 = vmatpush2.bf16.msra.mxu0 0
        %1501 = vmatprep.subr.bf16.mxu0 0
        %1502 = vmatpush2.bf16.msra.mxu0 0
        %1503 = vmatprep.subr.bf16.mxu0 0
        %1504 = vmatpush2.bf16.msra.mxu0 0
        %1505 = vmatprep.subr.bf16.mxu0 0
        %1506 = vmatpush2.bf16.msra.mxu0 0
        %1507 = vmatprep.subr.bf16.mxu0 0
        %1508 = vmatpush2.bf16.msra.mxu0 0
        %1509 = vmatprep.subr.bf16.mxu0 0
        %1510 = vmatpush2.bf16.msra.mxu0 0
        %1511 = vmatprep.mubr.bf16.mxu0 0
        %1512 = vmatmul.mubr.bf16.gmra.mxu0 %v1474
        %v1513 = vpop.f32.mrf.mxu0
        %v1514 = vadd.f32 0.0, %v1513
        %v1515 = vpop.f32.mrf.mxu0
        %v1516 = vpop.f32.mrf.mxu0
        %v1517 = vpop.f32.mrf.mxu0
        %1518 = vdwg.mxu0
        %1520 = vrot.lane.b32.xlu0 %v1514, 24
        %v1521 = vpop.permute.xlu0 %1520
        %vm1523 = vcmask 261312
        %1524 = vst.msk [vmem:[#allocation3] sm:$0xff] %vm1523, %v1521
        %v1525 = vld [vmem:[#allocation3] sm:$0xff]
        %v1526 = vpack.c.bf16 %v1525, %v1525
        %v1527 = vld [vmem:[%s845] sm:$0xf]
        %v1528 = vld [vmem:[%s845 + $0x4] sm:$0xf]
        %v1529 = vld [vmem:[%s845 + $0x8] sm:$0xf]
        %v1530 = vld [vmem:[%s845 + $0xc] sm:$0xf]
        %v1531 = vld [vmem:[%s711] sm:$0x1]
        %v1533 = vlaneseq
        %v1534 = vshrl.u32 %v1533, 7
        %v1535 = vsub.s32 0, %v1534
        %v1536 = vrot.slane %v1531, %v1535
        %v1542 = vunpack.c.l.b16 %v1527
        %v1543 = vunpack.c.l.b16 %v1528
        %v1544 = vunpack.c.l.b16 %v1529
        %v1545 = vunpack.c.l.b16 %v1530
        %v1546 = vpack.c.b16 %v1543, %v1542
        %v1547 = vpack.c.b16 %v1545, %v1544
        %v1551 = vsel %vm907, %v1526, 0
        %1553 = vmatprep.subr.bf16.mxu0 0
        %1554 = vmatpush1.bf16.msra.mxu0 0
        %1555 = vmatprep.subr.bf16.mxu0 0
        %1556 = vmatpush1.bf16.msra.mxu0 0
        %1557 = vmatprep.subr.bf16.mxu0 0
        %1558 = vmatpush1.bf16.msra.mxu0 0
        %1559 = vmatprep.subr.bf16.mxu0 0
        %1560 = vmatpush1.bf16.msra.mxu0 0
        %1561 = vmatprep.subr.bf16.mxu0 0
        %1562 = vmatpush1.bf16.msra.mxu0 0
        %1563 = vmatprep.subr.bf16.mxu0 0
        %1564 = vmatpush1.bf16.msra.mxu0 0
        %1565 = vmatprep.subr.bf16.mxu0 0
        %1566 = vmatpush1.bf16.msra.mxu0 %v1547
        %1567 = vmatprep.subr.bf16.mxu0 0
        %1568 = vmatpush1.bf16.msra.mxu0 %v1546
        %1569 = vmatprep.subr.bf16.mxu0 0
        %1570 = vmatpush2.bf16.msra.mxu0 0
        %1571 = vmatprep.subr.bf16.mxu0 0
        %1572 = vmatpush2.bf16.msra.mxu0 0
        %1573 = vmatprep.subr.bf16.mxu0 0
        %1574 = vmatpush2.bf16.msra.mxu0 0
        %1575 = vmatprep.subr.bf16.mxu0 0
        %1576 = vmatpush2.bf16.msra.mxu0 0
        %1577 = vmatprep.subr.bf16.mxu0 0
        %1578 = vmatpush2.bf16.msra.mxu0 0
        %1579 = vmatprep.subr.bf16.mxu0 0
        %1580 = vmatpush2.bf16.msra.mxu0 0
        %1581 = vmatprep.subr.bf16.mxu0 0
        %1582 = vmatpush2.bf16.msra.mxu0 0
        %1583 = vmatprep.subr.bf16.mxu0 0
        %1584 = vmatpush2.bf16.msra.mxu0 0
        %1585 = vmatprep.mubr.bf16.mxu0 0
        %1586 = vmatmul.mubr.bf16.gmra.mxu0 %v1551
        %v1587 = vpop.f32.mrf.mxu0
        %v1588 = vadd.f32 %v1536, %v1587
        %v1589 = vpop.f32.mrf.mxu0
        %v1590 = vpop.f32.mrf.mxu0
        %v1591 = vpop.f32.mrf.mxu0
        %1592 = vdwg.mxu0
        %v1593 = vadd.f32 %v873, %v1588
        %v1594 = vsel %vm907, %v1593, 0.0
        %1595 = vadd.xlane.f32.xlu0 %v1594
        %v1596 = vpop.xlane.xlu0 %1595
        %v1597 = vrcp.pop 32.0
        %v1598 = vmul.f32 %v1596, %v1597
        %v1599 = vsub.f32 %v1593, %v1598
        %v1600 = vmul.f32 %v1599, %v1599
        %v1601 = vsel %vm907, %v1600, 0.0
        %1602 = vadd.xlane.f32.xlu0 %v1601
        %v1603 = vpop.xlane.xlu0 %1602
        %v1604 = vmul.f32 %v1603, %v1597
        %v1605 = vadd.f32 %v1604, 1e-05
        %v1606 = vrsqrt.pop %v1605
        %v1607 = vmul.f32 %v1599, %v1606
        %v1608 = vld [vmem:[%s719] sm:$0x1]
        %v1610 = vlaneseq
        %v1611 = vshrl.u32 %v1610, 7
        %v1612 = vsub.s32 0, %v1611
        %v1613 = vrot.slane %v1608, %v1612
        %v1615 = vmul.f32 %v1607, %v1613
        %v1616 = vld [vmem:[%s727] sm:$0x1]
        %v1618 = vlaneseq
        %v1619 = vshrl.u32 %v1618, 7
        %v1620 = vsub.s32 0, %v1619
        %v1621 = vrot.slane %v1616, %v1620
        %v1623 = vadd.f32 %v1615, %v1621
        %v1624 = vpack.c.bf16 %v1623, %v1623
        %v1625 = vld [vmem:[%s850] sm:$0xf]
        %v1626 = vld [vmem:[%s850 + $0x4] sm:$0xf]
        %v1627 = vld [vmem:[%s850 + $0x8] sm:$0xf]
        %v1628 = vld [vmem:[%s850 + $0xc] sm:$0xf]
        %v1629 = vld [vmem:[%s735] sm:$0x1]
        %v1631 = vlaneseq
        %v1632 = vshrl.u32 %v1631, 7
        %v1633 = vsub.s32 0, %v1632
        %v1634 = vrot.slane %v1629, %v1633
        %v1640 = vunpack.c.l.b16 %v1625
        %v1641 = vunpack.c.l.b16 %v1626
        %v1642 = vunpack.c.l.b16 %v1627
        %v1643 = vunpack.c.l.b16 %v1628
        %v1644 = vpack.c.b16 %v1641, %v1640
        %v1645 = vpack.c.b16 %v1643, %v1642
        %v1649 = vsel %vm907, %v1624, 0
        %1651 = vmatprep.subr.bf16.mxu0 0
        %1652 = vmatpush1.bf16.msra.mxu0 0
        %1653 = vmatprep.subr.bf16.mxu0 0
        %1654 = vmatpush1.bf16.msra.mxu0 0
        %1655 = vmatprep.subr.bf16.mxu0 0
        %1656 = vmatpush1.bf16.msra.mxu0 0
        %1657 = vmatprep.subr.bf16.mxu0 0
        %1658 = vmatpush1.bf16.msra.mxu0 0
        %1659 = vmatprep.subr.bf16.mxu0 0
        %1660 = vmatpush1.bf16.msra.mxu0 0
        %1661 = vmatprep.subr.bf16.mxu0 0
        %1662 = vmatpush1.bf16.msra.mxu0 0
        %1663 = vmatprep.subr.bf16.mxu0 0
        %1664 = vmatpush1.bf16.msra.mxu0 %v1645
        %1665 = vmatprep.subr.bf16.mxu0 0
        %1666 = vmatpush1.bf16.msra.mxu0 %v1644
        %1667 = vmatprep.subr.bf16.mxu0 0
        %1668 = vmatpush2.bf16.msra.mxu0 0
        %1669 = vmatprep.subr.bf16.mxu0 0
        %1670 = vmatpush2.bf16.msra.mxu0 0
        %1671 = vmatprep.subr.bf16.mxu0 0
        %1672 = vmatpush2.bf16.msra.mxu0 0
        %1673 = vmatprep.subr.bf16.mxu0 0
        %1674 = vmatpush2.bf16.msra.mxu0 0
        %1675 = vmatprep.subr.bf16.mxu0 0
        %1676 = vmatpush2.bf16.msra.mxu0 0
        %1677 = vmatprep.subr.bf16.mxu0 0
        %1678 = vmatpush2.bf16.msra.mxu0 0
        %1679 = vmatprep.subr.bf16.mxu0 0
        %1680 = vmatpush2.bf16.msra.mxu0 0
        %1681 = vmatprep.subr.bf16.mxu0 0
        %1682 = vmatpush2.bf16.msra.mxu0 0
        %1683 = vmatprep.mubr.bf16.mxu0 0
        %1684 = vmatmul.mubr.bf16.gmra.mxu0 %v1649
        %v1685 = vpop.f32.mrf.mxu0
        %v1686 = vadd.f32 %v1634, %v1685
        %v1687 = vpop.f32.mrf.mxu0
        %v1688 = vpop.f32.mrf.mxu0
        %v1689 = vpop.f32.mrf.mxu0
        %1690 = vdwg.mxu0
        %v1691 = vmax.f32 %v1686, 0.0
        %v1692 = vpack.c.bf16 %v1691, %v1691
        %v1693 = vld [vmem:[%s855] sm:$0xf]
        %v1694 = vld [vmem:[%s855 + $0x4] sm:$0xf]
        %v1695 = vld [vmem:[%s855 + $0x8] sm:$0xf]
        %v1696 = vld [vmem:[%s855 + $0xc] sm:$0xf]
        %v1697 = vld [vmem:[%s855 + $0x10] sm:$0xf]
        %v1698 = vld [vmem:[%s855 + $0x14] sm:$0xf]
        %v1699 = vld [vmem:[%s855 + $0x18] sm:$0xf]
        %v1700 = vld [vmem:[%s855 + $0x1c] sm:$0xf]
        %v1701 = vld [vmem:[%s858] sm:$0x1]
        %v1703 = vlaneseq
        %v1704 = vshrl.u32 %v1703, 7
        %v1705 = vsub.s32 0, %v1704
        %v1706 = vrot.slane %v1701, %v1705
        %v1716 = vunpack.c.l.b16 %v1693
        %v1717 = vunpack.c.l.b16 %v1694
        %v1718 = vunpack.c.l.b16 %v1695
        %v1719 = vunpack.c.l.b16 %v1696
        %v1720 = vunpack.c.l.b16 %v1697
        %v1721 = vunpack.c.l.b16 %v1698
        %v1722 = vunpack.c.l.b16 %v1699
        %v1723 = vunpack.c.l.b16 %v1700
        %v1724 = vpack.c.b16 %v1717, %v1716
        %v1725 = vpack.c.b16 %v1719, %v1718
        %v1726 = vpack.c.b16 %v1721, %v1720
        %v1727 = vpack.c.b16 %v1723, %v1722
        %vm1732 = vcmask 523264
        %v1734 = vsel %vm1732, %v1692, 0
        %1736 = vmatprep.subr.bf16.mxu0 0
        %1737 = vmatpush1.bf16.msra.mxu0 0
        %1738 = vmatprep.subr.bf16.mxu0 0
        %1739 = vmatpush1.bf16.msra.mxu0 0
        %1740 = vmatprep.subr.bf16.mxu0 0
        %1741 = vmatpush1.bf16.msra.mxu0 0
        %1742 = vmatprep.subr.bf16.mxu0 0
        %1743 = vmatpush1.bf16.msra.mxu0 0
        %1744 = vmatprep.subr.bf16.mxu0 0
        %1745 = vmatpush1.bf16.msra.mxu0 %v1727
        %1746 = vmatprep.subr.bf16.mxu0 0
        %1747 = vmatpush1.bf16.msra.mxu0 %v1726
        %1748 = vmatprep.subr.bf16.mxu0 0
        %1749 = vmatpush1.bf16.msra.mxu0 %v1725
        %1750 = vmatprep.subr.bf16.mxu0 0
        %1751 = vmatpush1.bf16.msra.mxu0 %v1724
        %1752 = vmatprep.subr.bf16.mxu0 0
        %1753 = vmatpush2.bf16.msra.mxu0 0
        %1754 = vmatprep.subr.bf16.mxu0 0
        %1755 = vmatpush2.bf16.msra.mxu0 0
        %1756 = vmatprep.subr.bf16.mxu0 0
        %1757 = vmatpush2.bf16.msra.mxu0 0
        %1758 = vmatprep.subr.bf16.mxu0 0
        %1759 = vmatpush2.bf16.msra.mxu0 0
        %1760 = vmatprep.subr.bf16.mxu0 0
        %1761 = vmatpush2.bf16.msra.mxu0 0
        %1762 = vmatprep.subr.bf16.mxu0 0
        %1763 = vmatpush2.bf16.msra.mxu0 0
        %1764 = vmatprep.subr.bf16.mxu0 0
        %1765 = vmatpush2.bf16.msra.mxu0 0
        %1766 = vmatprep.subr.bf16.mxu0 0
        %1767 = vmatpush2.bf16.msra.mxu0 0
        %1768 = vmatprep.mubr.bf16.mxu0 0
        %1769 = vmatmul.mubr.bf16.gmra.mxu0 %v1734
        %v1770 = vpop.f32.mrf.mxu0
        %v1771 = vadd.f32 %v1706, %v1770
        %v1772 = vpop.f32.mrf.mxu0
        %v1773 = vpop.f32.mrf.mxu0
        %v1774 = vpop.f32.mrf.mxu0
        %1775 = vdwg.mxu0
        %v1776 = vadd.f32 %v1623, %v1771
        %v1777 = vsel %vm907, %v1776, 0.0
        %1778 = vadd.xlane.f32.xlu0 %v1777
        %v1779 = vpop.xlane.xlu0 %1778
        %v1780 = vmul.f32 %v1779, %v1597
        %v1781 = vsub.f32 %v1776, %v1780
        %v1782 = vmul.f32 %v1781, %v1781
        %v1783 = vsel %vm907, %v1782, 0.0
        %1784 = vadd.xlane.f32.xlu0 %v1783
        %v1785 = vpop.xlane.xlu0 %1784
        %v1786 = vmul.f32 %v1785, %v1597
        %v1787 = vadd.f32 %v1786, 1e-05
        %v1788 = vrsqrt.pop %v1787
        %v1789 = vmul.f32 %v1781, %v1788
        %v1790 = vld [vmem:[%s861] sm:$0x1]
        %v1792 = vlaneseq
        %v1793 = vshrl.u32 %v1792, 7
        %v1794 = vsub.s32 0, %v1793
        %v1795 = vrot.slane %v1790, %v1794
        %v1797 = vmul.f32 %v1789, %v1795
        %v1798 = vld [vmem:[%s864] sm:$0x1]
        %v1800 = vlaneseq
        %v1801 = vshrl.u32 %v1800, 7
        %v1802 = vsub.s32 0, %v1801
        %v1803 = vrot.slane %v1798, %v1802
        %v1805 = vadd.f32 %v1797, %v1803
        %1806 = vst.msk [vmem:[#allocation2] sm:$0xff] %vm907, %v1805
        %p1807 = scmp.eq.s32.totalorder %s47, 1
        // Predicated region
        $region117: #{tpu_custom_call.1} parent=83 // pred_check
          %p1808 = pneg %p1807
        $region118: #{tpu_custom_call.1} parent=83 // pred_check_branch
          %1810 = sbr.rel (%p1808) target = $region120
        $region119: #{tpu_custom_call.1} parent=83 // pred_region
          %v1811 = vpack.c.bf16 %v1805, %v1805
          %v1812 = vld [vmem:[%s14] sm:$0xf]
          %v1813 = vld [vmem:[%s14 + $0x4] sm:$0xf]
          %v1814 = vld [vmem:[%s14 + $0x8] sm:$0xf]
          %v1815 = vld [vmem:[%s14 + $0xc] sm:$0xf]
          %v1816 = vld [vmem:[%s15] sm:$0x1]
          %v1821 = vunpack.c.l.b16 %v1812
          %v1822 = vunpack.c.l.b16 %v1813
          %v1823 = vunpack.c.l.b16 %v1814
          %v1824 = vunpack.c.l.b16 %v1815
          %v1825 = vpack.c.b16 %v1822, %v1821
          %v1826 = vpack.c.b16 %v1824, %v1823
          %v1830 = vsel %vm907, %v1811, 0
          %1832 = vmatprep.subr.bf16.mxu0 0
          %1833 = vmatpush1.bf16.msra.mxu0 0
          %1834 = vmatprep.subr.bf16.mxu0 0
          %1835 = vmatpush1.bf16.msra.mxu0 0
          %1836 = vmatprep.subr.bf16.mxu0 0
          %1837 = vmatpush1.bf16.msra.mxu0 0
          %1838 = vmatprep.subr.bf16.mxu0 0
          %1839 = vmatpush1.bf16.msra.mxu0 0
          %1840 = vmatprep.subr.bf16.mxu0 0
          %1841 = vmatpush1.bf16.msra.mxu0 0
          %1842 = vmatprep.subr.bf16.mxu0 0
          %1843 = vmatpush1.bf16.msra.mxu0 0
          %1844 = vmatprep.subr.bf16.mxu0 0
          %1845 = vmatpush1.bf16.msra.mxu0 %v1826
          %1846 = vmatprep.subr.bf16.mxu0 0
          %1847 = vmatpush1.bf16.msra.mxu0 %v1825
          %1848 = vmatprep.subr.bf16.mxu0 0
          %1849 = vmatpush2.bf16.msra.mxu0 0
          %1850 = vmatprep.subr.bf16.mxu0 0
          %1851 = vmatpush2.bf16.msra.mxu0 0
          %1852 = vmatprep.subr.bf16.mxu0 0
          %1853 = vmatpush2.bf16.msra.mxu0 0
          %1854 = vmatprep.subr.bf16.mxu0 0
          %1855 = vmatpush2.bf16.msra.mxu0 0
          %1856 = vmatprep.subr.bf16.mxu0 0
          %1857 = vmatpush2.bf16.msra.mxu0 0
          %1858 = vmatprep.subr.bf16.mxu0 0
          %1859 = vmatpush2.bf16.msra.mxu0 0
          %1860 = vmatprep.subr.bf16.mxu0 0
          %1861 = vmatpush2.bf16.msra.mxu0 0
          %1862 = vmatprep.subr.bf16.mxu0 0
          %1863 = vmatpush2.bf16.msra.mxu0 0
          %1864 = vmatprep.mubr.bf16.mxu0 0
          %1865 = vmatmul.mubr.bf16.gmra.mxu0 %v1830
          %v1866 = vpop.f32.mrf.mxu0
          %v1867 = vadd.f32 %v1816, %v1866
          %v1868 = vpop.f32.mrf.mxu0
          %v1869 = vpop.f32.mrf.mxu0
          %v1870 = vpop.f32.mrf.mxu0
          %1871 = vdwg.mxu0
          %vm1872 = vcmask 1040384
          %v1873 = vsel %vm1872, %v1867, -inf
          %1874 = vmax.xlane.f32.xlu0 %v1873
          %v1875 = vpop.xlane.xlu0 %1874
          %v1876 = vsub.f32 %v1867, %v1875
          %v1877 = vmul.f32 %v1876, 1.442695
          %v1878 = vpow.pop %v1877
          %v1879 = vsel %vm1872, %v1878, 0.0
          %1880 = vadd.xlane.f32.xlu0 %v1879
          %v1881 = vpop.xlane.xlu0 %1880
          %v1882 = vlog2.pop %v1881
          %v1883 = vmul.f32 %v1882, 0.6931472
          %v1884 = vadd.f32 %v1875, %v1883
          %v1885 = vsub.f32 %v1867, %v1884
          %1886 = vst [vmem:[%s835] sm:$0x1] %v1885
        $region120: #{tpu_custom_call.1} parent=83 // pred_fallthru
          _
        %s1887 = sand.u32 %s468, 1
        %s1888 = scalar_lea.sflag [#allocation6], %s1887
        %s1889 = sand.u32 %s468, 1
        %s1890 = scalar_lea.vmem [#allocation16], %s1889
        // Predicated region
        $region121: #{tpu_custom_call.1} parent=83 // pred_check
          %p1891 = pneg %p478
        $region122: #{tpu_custom_call.1} parent=83 // pred_check_branch
          %1893 = sbr.rel (%p1891) target = $region124
        $region123: #{tpu_custom_call.1} parent=83 // pred_region
          %s1895 = ssub.s32 16, 16
          %1896 = vsyncadd %s1888, %s1895
          %s1897 = smul.addr %s46, 16
          %s1898 = scalar_lea.hbm %s16, %s1897
          %s1900 = sshll.u32 %s1890, 4
          %s1901 = int_to_ptr.vmem [resolvable:$true] %s1900
          %1903 = dma.vmem_to_hbm [thread:$0]  %s1901, 16, %s1898, %s1888
        $region124: #{tpu_custom_call.1} parent=83 // pred_fallthru
          _
      $region84: #{tpu_custom_call.1} parent=5 // pred_fallthru
        _
      %p1904 = scmp.le.s32.totalorder 2, %s37
      // Predicated region
      $region125: #{tpu_custom_call.1} parent=5 // pred_check
        %p1905 = pneg %p1904
      $region126: #{tpu_custom_call.1} parent=5 // pred_check_branch
        %1907 = sbr.rel (%p1905) target = $region128
      $region127: #{tpu_custom_call.1} parent=5 // pred_region
        %s1908 = ssub.s32 %s37, 2
        // Predicated region
        $region129: #{tpu_custom_call.1} parent=127 // pred_check
          %p1909 = pneg %p484
        $region130: #{tpu_custom_call.1} parent=127 // pred_check_branch
          %1911 = sbr.rel (%p1909) target = $region132
        $region131: #{tpu_custom_call.1} parent=127 // pred_region
          %s1912 = sand.u32 %s469, 1
          %s1913 = scalar_lea.sflag [#allocation6], %s1912
          %s1914 = sand.u32 %s469, 1
          %s1915 = scalar_lea.vmem [#allocation16], %s1914
          %1916 = dma.done %s1913, 16
        $region132: #{tpu_custom_call.1} parent=127 // pred_fallthru
          _
      $region128: #{tpu_custom_call.1} parent=5 // pred_fallthru
        _
    $region6: #{tpu_custom_call.1} parent=1 // loop_footer
      %s41 = sadd.s32 1, %s37
    $region7: #{tpu_custom_call.1} parent=1 // loop_footer_branch
      %36 = sbr.rel target = $region3
    $region8: #{tpu_custom_call.1} parent=1 // loop_exit
      _
    %1917 = vsyncpa [#allocation5], 1
    %s1918 = scalar_lea.sflag [#allocation5], 1
    %1919 = vsyncpa %s1918, 1
    %1920 = vsyncpa [#allocation8], 1
    %s1921 = scalar_lea.sflag [#allocation8], 1
    %1922 = vsyncpa %s1921, 1
    %1923 = vsyncpa [#allocation11], 1
    %s1924 = scalar_lea.sflag [#allocation11], 1
    %1925 = vsyncpa %s1924, 1
    %1926 = vsyncpa [#allocation14], 1
    %s1927 = scalar_lea.sflag [#allocation14], 1
    %1928 = vsyncpa %s1927, 1
    %1929 = vsyncpa [#allocation6], 1
    %s1930 = scalar_lea.sflag [#allocation6], 1
    %1931 = vsyncpa %s1930, 1

</llo_original>
